<compile_context>
chip_gen: v5e
topology: v5e:2x2
jax: 0.10.0
libtpu: 0.0.40
codegen_flags: <defaults>
</compile_context>

<pallas_src>
import math
import functools

import jax
import jax.numpy as jnp
import numpy as np
from jax.experimental import pallas as pl
from jax.experimental.pallas import tpu as pltpu

LN_EPS = 1e-5


# ----------------------------------------------------------------------------
# Pallas kernel: one full pre-norm encoder layer (LN -> MHA -> add -> LN ->
# MLP -> add) for a single batch element's [T, D] token slab.
# ----------------------------------------------------------------------------
def _encoder_layer_kernel(x_ref, pos_ref,
                          ln1w_ref, ln1b_ref, ln2w_ref, ln2b_ref,
                          wq_ref, wk_ref, wv_ref, bq_ref, bk_ref, bv_ref,
                          wo_ref, bo_ref,
                          w1_ref, b1_ref, w2_ref, b2_ref,
                          out_ref, *, num_heads):
    f32 = jnp.float32
    bf16 = jnp.bfloat16

    x = x_ref[0].astype(f32)        # [T, D]
    pos = pos_ref[0].astype(f32)    # [T, D]
    T, D = x.shape
    H = num_heads
    Dh = D // H

    def layer_norm(v, w_ref, b_ref):
        w = w_ref[...].astype(f32)          # [1, D]
        b = b_ref[...].astype(f32)          # [1, D]
        mu = jnp.mean(v, axis=-1, keepdims=True)
        var = jnp.mean(jnp.square(v - mu), axis=-1, keepdims=True)
        return (v - mu) * jax.lax.rsqrt(var + LN_EPS) * w + b

    def linear(v, w_ref, b_ref):
        # Weights pre-transposed to [in, out] + pre-cast to bf16 in the wrapper:
        # bf16 MXU operands, f32 accumulation, no in-kernel weight transpose.
        y = jnp.dot(v.astype(bf16), w_ref[...], preferred_element_type=f32)
        return y + b_ref[...].astype(f32)

    # ---- pre-norm + positional embedding on q/k ----
    src = layer_norm(x, ln1w_ref, ln1b_ref)          # [T, D]
    qk_in = src + pos
    q = linear(qk_in, wq_ref, bq_ref)                # [T, D] f32
    k = linear(qk_in, wk_ref, bk_ref)
    v = linear(src, wv_ref, bv_ref)

    # ---- multi-head attention: heads handled as one batched matmul ----
    # TODO(synk): for long sequences, tile the KV axis (flash-style online
    # softmax) instead of holding the full [H, T, T] score tensor in VMEM.
    scale = 1.0 / math.sqrt(Dh)
    qh = jnp.transpose((q * scale).reshape(T, H, Dh), (1, 0, 2)).astype(bf16)
    kh = jnp.transpose(k.reshape(T, H, Dh), (1, 0, 2)).astype(bf16)
    vh = jnp.transpose(v.reshape(T, H, Dh), (1, 0, 2)).astype(bf16)

    s = jnp.einsum("hqd,hkd->hqk", qh, kh,
                   preferred_element_type=f32)                   # [H, T, T]
    s = s - jnp.max(s, axis=-1, keepdims=True)
    p = jnp.exp(s)
    p = p * pl.reciprocal(jnp.sum(p, axis=-1, keepdims=True), approx=True)

    o = jnp.einsum("hqk,hkd->hqd", p.astype(bf16), vh,
                   preferred_element_type=f32)                   # [H, T, Dh]
    attn = jnp.transpose(o, (1, 0, 2)).reshape(T, D)             # [T, D]
    attn = linear(attn, wo_ref, bo_ref)

    # ---- residual + MLP ----
    src1 = attn + x
    src2 = layer_norm(src1, ln2w_ref, ln2b_ref)
    h1 = jnp.maximum(linear(src2, w1_ref, b1_ref), 0.0)          # ReLU
    h2 = linear(h1, w2_ref, b2_ref)
    out = h2 + src1

    out_ref[0] = out.astype(out_ref.dtype)


# ----------------------------------------------------------------------------
# Wrappers
# ----------------------------------------------------------------------------
_PARAM_ORDER = ("ln1w", "ln1b", "ln2w", "ln2b",
                "wq", "wk", "wv", "bq", "bk", "bv",
                "wo", "bo", "w1", "b1", "w2", "b2")
_MATMUL_WEIGHTS = ("wq", "wk", "wv", "wo", "w1", "w2")


def _prep_layer_params(p):
    """PyTorch Linear layout ([out, in], f32) -> kernel layout ([in, out], bf16)."""
    out = dict(p)
    for name in _MATMUL_WEIGHTS:
        out[name] = jnp.asarray(p[name]).T.astype(jnp.bfloat16)
    return out


def _const_index_map(ndim):
    return lambda b: (0,) * ndim


def encoder_layer_pallas(x, pos, params, *, num_heads):
    """x, pos: [B, T, D] batch-major.  One encoder layer, gridded over batch."""
    B, T, D = x.shape
    assert D % num_heads == 0, "embed_dim must be divisible by num_heads"
    weights = tuple(params[n] for n in _PARAM_ORDER)

    def tok_spec():
        return pl.BlockSpec((1, T, D), lambda b: (b, 0, 0))

    # Weights get a constant index_map -> stay resident in VMEM across the grid.
    w_specs = [pl.BlockSpec(w.shape, _const_index_map(w.ndim)) for w in weights]

    kernel = functools.partial(_encoder_layer_kernel, num_heads=num_heads)
    return pl.pallas_call(
        kernel,
        out_shape=jax.ShapeDtypeStruct(x.shape, x.dtype),
        grid=(B,),
        in_specs=[tok_spec(), tok_spec()] + w_specs,
        out_specs=tok_spec(),
        compiler_params=pltpu.CompilerParams(
            dimension_semantics=("parallel",),      # megacore split on v7x
            vmem_limit_bytes=64 * 1024 * 1024),     # sized against v7x VMEM
    )(x, pos, *weights)


def transformer_encoder(tgt, pos, layer_params, *, num_heads):
    """tgt/pos: [T, B, D] (PyTorch convention).  Returns [T, B, D]."""
    x = jnp.transpose(tgt, (1, 0, 2))       # [B, T, D]  (once, not per layer)
    posb = jnp.transpose(pos, (1, 0, 2))
    for p in layer_params:
        x = encoder_layer_pallas(x, posb, _prep_layer_params(p),
                                 num_heads=num_heads)
    return jnp.transpose(x, (1, 0, 2))


# ----------------------------------------------------------------------------
# Pure-JAX reference (mirrors PyTorch forward_pre / nn.MultiheadAttention)
# ----------------------------------------------------------------------------
def _ref_layer(tgt, pos, p, num_heads):
    T, B, D = tgt.shape
    H, Dh = num_heads, D // num_heads

    def ln(v, w, b):
        mu = v.mean(-1, keepdims=True)
        var = ((v - mu) ** 2).mean(-1, keepdims=True)
        return (v - mu) / jnp.sqrt(var + LN_EPS) * w.reshape(-1) + b.reshape(-1)

    def lin(v, w, b):
        return v @ w.T + b.reshape(-1)

    src = ln(tgt, p["ln1w"], p["ln1b"])
    qk = src + pos
    q = lin(qk, p["wq"], p["bq"])
    k = lin(qk, p["wk"], p["bk"])
    v = lin(src, p["wv"], p["bv"])

    def split(x):  # [T,B,D] -> [B,H,T,Dh]
        return x.reshape(T, B, H, Dh).transpose(1, 2, 0, 3)

    qh = split(q) * (1.0 / math.sqrt(Dh))
    kh, vh = split(k), split(v)
    s = jnp.einsum("bhtd,bhsd->bhts", qh, kh)
    pw = jax.nn.softmax(s, axis=-1)
    o = jnp.einsum("bhts,bhsd->bhtd", pw, vh)
    o = o.transpose(2, 0, 1, 3).reshape(T, B, D)
    attn = lin(o, p["wo"], p["bo"])

    src1 = attn + tgt
    src2 = ln(src1, p["ln2w"], p["ln2b"])
    h1 = jnp.maximum(lin(src2, p["w1"], p["b1"]), 0.0)
    h2 = lin(h1, p["w2"], p["b2"])
    return h2 + src1


def ref_encoder(tgt, pos, layer_params, *, num_heads):
    out = tgt
    for p in layer_params:
        out = _ref_layer(out, pos, p, num_heads)
    return out


# ----------------------------------------------------------------------------
# Deterministic parameter init (PyTorch layout: Linear weights are [out, in])
# ----------------------------------------------------------------------------
def init_layer_params(key, D, M):
    ks = jax.random.split(key, 12)
    n = lambda k, shape, s: (jax.random.normal(k, shape, jnp.float32) * s)
    return dict(
        ln1w=jnp.ones((1, D), jnp.float32), ln1b=jnp.zeros((1, D), jnp.float32),
        ln2w=jnp.ones((1, D), jnp.float32), ln2b=jnp.zeros((1, D), jnp.float32),
        wq=n(ks[0], (D, D), 0.08), wk=n(ks[1], (D, D), 0.08),
        wv=n(ks[2], (D, D), 0.08),
        bq=n(ks[3], (1, D), 0.01), bk=n(ks[4], (1, D), 0.01),
        bv=n(ks[5], (1, D), 0.01),
        wo=n(ks[6], (D, D), 0.08), bo=n(ks[7], (1, D), 0.01),
        w1=n(ks[8], (M, D), 0.08), b1=n(ks[9], (1, M), 0.01),
        w2=n(ks[10], (D, M), 0.08), b2=n(ks[11], (1, D), 0.01),
    )


if __name__ == "__main__":
    # TransformerEncoder(num_layers=2, embed_dim=32, num_heads=4, mlp_dim=64)
    T, B, D, H, M, L = 8, 2, 32, 4, 64, 2

    key = jax.random.PRNGKey(0)
    k_tgt, k_pos, k_par = jax.random.split(key, 3)
    tgt = jax.random.normal(k_tgt, (T, B, D), jnp.float32)
    pos = jax.random.normal(k_pos, (T, B, D), jnp.float32)
    params = [init_layer_params(k, D, M) for k in jax.random.split(k_par, L)]

    out = transformer_encoder(tgt, pos, params, num_heads=H)
    out = jax.block_until_ready(out)

    ref = ref_encoder(tgt, pos, params, num_heads=H)
    # bf16 MXU operands (f32 accumulation) -> slightly looser tolerance vs f32 ref.
    np.testing.assert_allclose(np.asarray(out), np.asarray(ref),
                               rtol=5e-2, atol=5e-2)
    assert out.shape == (T, B, D)
    print("KERNEL_OK")
</pallas_src>

<mosaic_0001>
module attributes {stable_mosaic.version = 11 : i64} {
  func.func @_encoder_layer_kernel(%arg0: i32, %arg1: memref<1x8x32xf32, #tpu.memory_space<vmem>>, %arg2: memref<1x8x32xf32, #tpu.memory_space<vmem>>, %arg3: memref<1x32xf32, #tpu.memory_space<vmem>>, %arg4: memref<1x32xf32, #tpu.memory_space<vmem>>, %arg5: memref<1x32xf32, #tpu.memory_space<vmem>>, %arg6: memref<1x32xf32, #tpu.memory_space<vmem>>, %arg7: memref<32x32xbf16, #tpu.memory_space<vmem>>, %arg8: memref<32x32xbf16, #tpu.memory_space<vmem>>, %arg9: memref<32x32xbf16, #tpu.memory_space<vmem>>, %arg10: memref<1x32xf32, #tpu.memory_space<vmem>>, %arg11: memref<1x32xf32, #tpu.memory_space<vmem>>, %arg12: memref<1x32xf32, #tpu.memory_space<vmem>>, %arg13: memref<32x32xbf16, #tpu.memory_space<vmem>>, %arg14: memref<1x32xf32, #tpu.memory_space<vmem>>, %arg15: memref<32x64xbf16, #tpu.memory_space<vmem>>, %arg16: memref<1x64xf32, #tpu.memory_space<vmem>>, %arg17: memref<64x32xbf16, #tpu.memory_space<vmem>>, %arg18: memref<1x32xf32, #tpu.memory_space<vmem>>, %arg19: memref<1x8x32xf32, #tpu.memory_space<vmem>>) attributes {dimension_semantics = [#tpu.dimension_semantics<parallel>], iteration_bounds = array<i64: 2>, scalar_prefetch = 0 : i64, scratch_operands = 0 : i64, tpu.core_type = #tpu.core_type<tc>, window_params = [{transform_indices = @transform_0, window_bounds = array<i64: 1, 8, 32>}, {transform_indices = @transform_1, window_bounds = array<i64: 1, 8, 32>}, {pipeline_mode = #tpu.pipeline_mode<synchronous>, transform_indices = @transform_2, window_bounds = array<i64: 1, 32>}, {pipeline_mode = #tpu.pipeline_mode<synchronous>, transform_indices = @transform_3, window_bounds = array<i64: 1, 32>}, {pipeline_mode = #tpu.pipeline_mode<synchronous>, transform_indices = @transform_4, window_bounds = array<i64: 1, 32>}, {pipeline_mode = #tpu.pipeline_mode<synchronous>, transform_indices = @transform_5, window_bounds = array<i64: 1, 32>}, {pipeline_mode = #tpu.pipeline_mode<synchronous>, transform_indices = @transform_6, window_bounds = array<i64: 32, 32>}, {pipeline_mode = #tpu.pipeline_mode<synchronous>, transform_indices = @transform_7, window_bounds = array<i64: 32, 32>}, {pipeline_mode = #tpu.pipeline_mode<synchronous>, transform_indices = @transform_8, window_bounds = array<i64: 32, 32>}, {pipeline_mode = #tpu.pipeline_mode<synchronous>, transform_indices = @transform_9, window_bounds = array<i64: 1, 32>}, {pipeline_mode = #tpu.pipeline_mode<synchronous>, transform_indices = @transform_10, window_bounds = array<i64: 1, 32>}, {pipeline_mode = #tpu.pipeline_mode<synchronous>, transform_indices = @transform_11, window_bounds = array<i64: 1, 32>}, {pipeline_mode = #tpu.pipeline_mode<synchronous>, transform_indices = @transform_12, window_bounds = array<i64: 32, 32>}, {pipeline_mode = #tpu.pipeline_mode<synchronous>, transform_indices = @transform_13, window_bounds = array<i64: 1, 32>}, {pipeline_mode = #tpu.pipeline_mode<synchronous>, transform_indices = @transform_14, window_bounds = array<i64: 32, 64>}, {pipeline_mode = #tpu.pipeline_mode<synchronous>, transform_indices = @transform_15, window_bounds = array<i64: 1, 64>}, {pipeline_mode = #tpu.pipeline_mode<synchronous>, transform_indices = @transform_16, window_bounds = array<i64: 64, 32>}, {pipeline_mode = #tpu.pipeline_mode<synchronous>, transform_indices = @transform_17, window_bounds = array<i64: 1, 32>}, {transform_indices = @transform_18, window_bounds = array<i64: 1, 8, 32>}]} {
    %c0 = arith.constant 0 : index
    %c0_0 = arith.constant 0 : index
    %c0_1 = arith.constant 0 : index
    %0 = vector.load %arg1[%c0, %c0_0, %c0_1] : memref<1x8x32xf32, #tpu.memory_space<vmem>>, vector<1x8x32xf32>
    %1 = vector.shape_cast %0 : vector<1x8x32xf32> to vector<8x32xf32>
    %c0_2 = arith.constant 0 : index
    %c0_3 = arith.constant 0 : index
    %c0_4 = arith.constant 0 : index
    %2 = vector.load %arg2[%c0_2, %c0_3, %c0_4] : memref<1x8x32xf32, #tpu.memory_space<vmem>>, vector<1x8x32xf32>
    %3 = vector.shape_cast %2 : vector<1x8x32xf32> to vector<8x32xf32>
    %c0_5 = arith.constant 0 : index
    %c0_6 = arith.constant 0 : index
    %4 = vector.load %arg3[%c0_5, %c0_6] : memref<1x32xf32, #tpu.memory_space<vmem>>, vector<1x32xf32>
    %c0_7 = arith.constant 0 : index
    %c0_8 = arith.constant 0 : index
    %5 = vector.load %arg4[%c0_7, %c0_8] : memref<1x32xf32, #tpu.memory_space<vmem>>, vector<1x32xf32>
    %cst = arith.constant dense<0.000000e+00> : vector<8xf32>
    %6 = vector.multi_reduction <add>, %1, %cst [1] : vector<8x32xf32> to vector<8xf32>
    %7 = vector.shape_cast %6 : vector<8xf32> to vector<8x1xf32>
    %cst_9 = arith.constant 3.200000e+01 : f32
    %8 = vector.broadcast %cst_9 : f32 to vector<8x1xf32>
    %9 = arith.divf %7, %8 : vector<8x1xf32>
    %10 = vector.broadcast %9 : vector<8x1xf32> to vector<8x32xf32>
    %11 = arith.subf %1, %10 : vector<8x32xf32>
    %12 = arith.mulf %11, %11 : vector<8x32xf32>
    %cst_10 = arith.constant dense<0.000000e+00> : vector<8xf32>
    %13 = vector.multi_reduction <add>, %12, %cst_10 [1] : vector<8x32xf32> to vector<8xf32>
    %14 = vector.shape_cast %13 : vector<8xf32> to vector<8x1xf32>
    %cst_11 = arith.constant 3.200000e+01 : f32
    %15 = vector.broadcast %cst_11 : f32 to vector<8x1xf32>
    %16 = arith.divf %14, %15 : vector<8x1xf32>
    %17 = vector.broadcast %9 : vector<8x1xf32> to vector<8x32xf32>
    %18 = arith.subf %1, %17 : vector<8x32xf32>
    %cst_12 = arith.constant 9.99999974E-6 : f32
    %19 = vector.broadcast %cst_12 : f32 to vector<8x1xf32>
    %20 = arith.addf %16, %19 : vector<8x1xf32>
    %21 = math.rsqrt %20 : vector<8x1xf32>
    %22 = vector.broadcast %21 : vector<8x1xf32> to vector<8x32xf32>
    %23 = arith.mulf %18, %22 : vector<8x32xf32>
    %24 = vector.broadcast %4 : vector<1x32xf32> to vector<8x32xf32>
    %25 = arith.mulf %23, %24 : vector<8x32xf32>
    %26 = vector.broadcast %5 : vector<1x32xf32> to vector<8x32xf32>
    %27 = arith.addf %25, %26 : vector<8x32xf32>
    %28 = arith.addf %27, %3 : vector<8x32xf32>
    %29 = arith.truncf %28 : vector<8x32xf32> to vector<8x32xbf16>
    %c0_13 = arith.constant 0 : index
    %c0_14 = arith.constant 0 : index
    %30 = vector.load %arg7[%c0_13, %c0_14] : memref<32x32xbf16, #tpu.memory_space<vmem>>, vector<32x32xbf16>
    %cst_15 = arith.constant dense<0.000000e+00> : vector<8x32xf32>
    %31 = tpu.matmul %29, %30, %cst_15 {dimension_numbers = #tpu.dot_dimension_numbers<[1], [0], [0], [1], [0, 0, 1, 1], [], []>} : vector<8x32xbf16>, vector<32x32xbf16>, vector<8x32xf32> -> vector<8x32xf32>
    %c0_16 = arith.constant 0 : index
    %c0_17 = arith.constant 0 : index
    %32 = vector.load %arg10[%c0_16, %c0_17] : memref<1x32xf32, #tpu.memory_space<vmem>>, vector<1x32xf32>
    %33 = vector.broadcast %32 : vector<1x32xf32> to vector<8x32xf32>
    %34 = arith.addf %31, %33 : vector<8x32xf32>
    %35 = arith.truncf %28 : vector<8x32xf32> to vector<8x32xbf16>
    %c0_18 = arith.constant 0 : index
    %c0_19 = arith.constant 0 : index
    %36 = vector.load %arg8[%c0_18, %c0_19] : memref<32x32xbf16, #tpu.memory_space<vmem>>, vector<32x32xbf16>
    %cst_20 = arith.constant dense<0.000000e+00> : vector<8x32xf32>
    %37 = tpu.matmul %35, %36, %cst_20 {dimension_numbers = #tpu.dot_dimension_numbers<[1], [0], [0], [1], [0, 0, 1, 1], [], []>} : vector<8x32xbf16>, vector<32x32xbf16>, vector<8x32xf32> -> vector<8x32xf32>
    %c0_21 = arith.constant 0 : index
    %c0_22 = arith.constant 0 : index
    %38 = vector.load %arg11[%c0_21, %c0_22] : memref<1x32xf32, #tpu.memory_space<vmem>>, vector<1x32xf32>
    %39 = vector.broadcast %38 : vector<1x32xf32> to vector<8x32xf32>
    %40 = arith.addf %37, %39 : vector<8x32xf32>
    %41 = arith.truncf %27 : vector<8x32xf32> to vector<8x32xbf16>
    %c0_23 = arith.constant 0 : index
    %c0_24 = arith.constant 0 : index
    %42 = vector.load %arg9[%c0_23, %c0_24] : memref<32x32xbf16, #tpu.memory_space<vmem>>, vector<32x32xbf16>
    %cst_25 = arith.constant dense<0.000000e+00> : vector<8x32xf32>
    %43 = tpu.matmul %41, %42, %cst_25 {dimension_numbers = #tpu.dot_dimension_numbers<[1], [0], [0], [1], [0, 0, 1, 1], [], []>} : vector<8x32xbf16>, vector<32x32xbf16>, vector<8x32xf32> -> vector<8x32xf32>
    %c0_26 = arith.constant 0 : index
    %c0_27 = arith.constant 0 : index
    %44 = vector.load %arg12[%c0_26, %c0_27] : memref<1x32xf32, #tpu.memory_space<vmem>>, vector<1x32xf32>
    %45 = vector.broadcast %44 : vector<1x32xf32> to vector<8x32xf32>
    %46 = arith.addf %43, %45 : vector<8x32xf32>
    %cst_28 = arith.constant 0.353553385 : f32
    %47 = vector.broadcast %cst_28 : f32 to vector<8x32xf32>
    %48 = arith.mulf %34, %47 : vector<8x32xf32>
    %49 = vector.shape_cast %48 : vector<8x32xf32> to vector<8x4x8xf32>
    %50 = tpu.transpose %49, [1, 0, 2] : vector<8x4x8xf32> -> vector<4x8x8xf32>
    %51 = arith.truncf %50 : vector<4x8x8xf32> to vector<4x8x8xbf16>
    %52 = vector.shape_cast %40 : vector<8x32xf32> to vector<8x4x8xf32>
    %53 = tpu.transpose %52, [1, 0, 2] : vector<8x4x8xf32> -> vector<4x8x8xf32>
    %54 = arith.truncf %53 : vector<4x8x8xf32> to vector<4x8x8xbf16>
    %55 = vector.shape_cast %46 : vector<8x32xf32> to vector<8x4x8xf32>
    %56 = tpu.transpose %55, [1, 0, 2] : vector<8x4x8xf32> -> vector<4x8x8xf32>
    %57 = arith.truncf %56 : vector<4x8x8xf32> to vector<4x8x8xbf16>
    "tpu.trace_start"() <{level = 10 : i32, message = "hqd,hkd->hqk"}> : () -> ()
    %cst_29 = arith.constant dense<0.000000e+00> : vector<4x8x8xf32>
    %58 = tpu.matmul %51, %54, %cst_29 {dimension_numbers = #tpu.dot_dimension_numbers<[2], [2], [1], [1], [0, 0, 0, 1, 1, 1], [0], [0]>} : vector<4x8x8xbf16>, vector<4x8x8xbf16>, vector<4x8x8xf32> -> vector<4x8x8xf32>
    "tpu.trace_stop"() : () -> ()
    %cst_30 = arith.constant dense<0xFF800000> : vector<4x8xf32>
    %59 = vector.multi_reduction <maximumf>, %58, %cst_30 [2] : vector<4x8x8xf32> to vector<4x8xf32>
    %60 = vector.shape_cast %59 : vector<4x8xf32> to vector<4x8x1xf32>
    %61 = vector.broadcast %60 : vector<4x8x1xf32> to vector<4x8x8xf32>
    %62 = arith.subf %58, %61 : vector<4x8x8xf32>
    %63 = math.exp %62 : vector<4x8x8xf32>
    %cst_31 = arith.constant dense<0.000000e+00> : vector<4x8xf32>
    %64 = vector.multi_reduction <add>, %63, %cst_31 [2] : vector<4x8x8xf32> to vector<4x8xf32>
    %65 = vector.shape_cast %64 : vector<4x8xf32> to vector<4x8x1xf32>
    %66 = tpu.reciprocal %65 {approx = true} : vector<4x8x1xf32> -> vector<4x8x1xf32>
    %67 = vector.broadcast %66 : vector<4x8x1xf32> to vector<4x8x8xf32>
    %68 = arith.mulf %63, %67 : vector<4x8x8xf32>
    %69 = arith.truncf %68 : vector<4x8x8xf32> to vector<4x8x8xbf16>
    "tpu.trace_start"() <{level = 10 : i32, message = "hqk,hkd->hqd"}> : () -> ()
    %cst_32 = arith.constant dense<0.000000e+00> : vector<4x8x8xf32>
    %70 = tpu.matmul %69, %57, %cst_32 {dimension_numbers = #tpu.dot_dimension_numbers<[2], [1], [1], [2], [0, 0, 0, 1, 1, 2], [0], [0]>} : vector<4x8x8xbf16>, vector<4x8x8xbf16>, vector<4x8x8xf32> -> vector<4x8x8xf32>
    "tpu.trace_stop"() : () -> ()
    %71 = tpu.transpose %70, [1, 0, 2] : vector<4x8x8xf32> -> vector<8x4x8xf32>
    %72 = vector.shape_cast %71 : vector<8x4x8xf32> to vector<8x32xf32>
    %73 = arith.truncf %72 : vector<8x32xf32> to vector<8x32xbf16>
    %c0_33 = arith.constant 0 : index
    %c0_34 = arith.constant 0 : index
    %74 = vector.load %arg13[%c0_33, %c0_34] : memref<32x32xbf16, #tpu.memory_space<vmem>>, vector<32x32xbf16>
    %cst_35 = arith.constant dense<0.000000e+00> : vector<8x32xf32>
    %75 = tpu.matmul %73, %74, %cst_35 {dimension_numbers = #tpu.dot_dimension_numbers<[1], [0], [0], [1], [0, 0, 1, 1], [], []>} : vector<8x32xbf16>, vector<32x32xbf16>, vector<8x32xf32> -> vector<8x32xf32>
    %c0_36 = arith.constant 0 : index
    %c0_37 = arith.constant 0 : index
    %76 = vector.load %arg14[%c0_36, %c0_37] : memref<1x32xf32, #tpu.memory_space<vmem>>, vector<1x32xf32>
    %77 = vector.broadcast %76 : vector<1x32xf32> to vector<8x32xf32>
    %78 = arith.addf %75, %77 : vector<8x32xf32>
    %79 = arith.addf %78, %1 : vector<8x32xf32>
    %c0_38 = arith.constant 0 : index
    %c0_39 = arith.constant 0 : index
    %80 = vector.load %arg5[%c0_38, %c0_39] : memref<1x32xf32, #tpu.memory_space<vmem>>, vector<1x32xf32>
    %c0_40 = arith.constant 0 : index
    %c0_41 = arith.constant 0 : index
    %81 = vector.load %arg6[%c0_40, %c0_41] : memref<1x32xf32, #tpu.memory_space<vmem>>, vector<1x32xf32>
    %cst_42 = arith.constant dense<0.000000e+00> : vector<8xf32>
    %82 = vector.multi_reduction <add>, %79, %cst_42 [1] : vector<8x32xf32> to vector<8xf32>
    %83 = vector.shape_cast %82 : vector<8xf32> to vector<8x1xf32>
    %cst_43 = arith.constant 3.200000e+01 : f32
    %84 = vector.broadcast %cst_43 : f32 to vector<8x1xf32>
    %85 = arith.divf %83, %84 : vector<8x1xf32>
    %86 = vector.broadcast %85 : vector<8x1xf32> to vector<8x32xf32>
    %87 = arith.subf %79, %86 : vector<8x32xf32>
    %88 = arith.mulf %87, %87 : vector<8x32xf32>
    %cst_44 = arith.constant dense<0.000000e+00> : vector<8xf32>
    %89 = vector.multi_reduction <add>, %88, %cst_44 [1] : vector<8x32xf32> to vector<8xf32>
    %90 = vector.shape_cast %89 : vector<8xf32> to vector<8x1xf32>
    %cst_45 = arith.constant 3.200000e+01 : f32
    %91 = vector.broadcast %cst_45 : f32 to vector<8x1xf32>
    %92 = arith.divf %90, %91 : vector<8x1xf32>
    %93 = vector.broadcast %85 : vector<8x1xf32> to vector<8x32xf32>
    %94 = arith.subf %79, %93 : vector<8x32xf32>
    %cst_46 = arith.constant 9.99999974E-6 : f32
    %95 = vector.broadcast %cst_46 : f32 to vector<8x1xf32>
    %96 = arith.addf %92, %95 : vector<8x1xf32>
    %97 = math.rsqrt %96 : vector<8x1xf32>
    %98 = vector.broadcast %97 : vector<8x1xf32> to vector<8x32xf32>
    %99 = arith.mulf %94, %98 : vector<8x32xf32>
    %100 = vector.broadcast %80 : vector<1x32xf32> to vector<8x32xf32>
    %101 = arith.mulf %99, %100 : vector<8x32xf32>
    %102 = vector.broadcast %81 : vector<1x32xf32> to vector<8x32xf32>
    %103 = arith.addf %101, %102 : vector<8x32xf32>
    %104 = arith.truncf %103 : vector<8x32xf32> to vector<8x32xbf16>
    %c0_47 = arith.constant 0 : index
    %c0_48 = arith.constant 0 : index
    %105 = vector.load %arg15[%c0_47, %c0_48] : memref<32x64xbf16, #tpu.memory_space<vmem>>, vector<32x64xbf16>
    %cst_49 = arith.constant dense<0.000000e+00> : vector<8x64xf32>
    %106 = tpu.matmul %104, %105, %cst_49 {dimension_numbers = #tpu.dot_dimension_numbers<[1], [0], [0], [1], [0, 0, 1, 1], [], []>} : vector<8x32xbf16>, vector<32x64xbf16>, vector<8x64xf32> -> vector<8x64xf32>
    %c0_50 = arith.constant 0 : index
    %c0_51 = arith.constant 0 : index
    %107 = vector.load %arg16[%c0_50, %c0_51] : memref<1x64xf32, #tpu.memory_space<vmem>>, vector<1x64xf32>
    %108 = vector.broadcast %107 : vector<1x64xf32> to vector<8x64xf32>
    %109 = arith.addf %106, %108 : vector<8x64xf32>
    %cst_52 = arith.constant 0.000000e+00 : f32
    %110 = vector.broadcast %cst_52 : f32 to vector<8x64xf32>
    %111 = arith.maximumf %109, %110 : vector<8x64xf32>
    %112 = arith.truncf %111 : vector<8x64xf32> to vector<8x64xbf16>
    %c0_53 = arith.constant 0 : index
    %c0_54 = arith.constant 0 : index
    %113 = vector.load %arg17[%c0_53, %c0_54] : memref<64x32xbf16, #tpu.memory_space<vmem>>, vector<64x32xbf16>
    %cst_55 = arith.constant dense<0.000000e+00> : vector<8x32xf32>
    %114 = tpu.matmul %112, %113, %cst_55 {dimension_numbers = #tpu.dot_dimension_numbers<[1], [0], [0], [1], [0, 0, 1, 1], [], []>} : vector<8x64xbf16>, vector<64x32xbf16>, vector<8x32xf32> -> vector<8x32xf32>
    %c0_56 = arith.constant 0 : index
    %c0_57 = arith.constant 0 : index
    %115 = vector.load %arg18[%c0_56, %c0_57] : memref<1x32xf32, #tpu.memory_space<vmem>>, vector<1x32xf32>
    %116 = vector.broadcast %115 : vector<1x32xf32> to vector<8x32xf32>
    %117 = arith.addf %114, %116 : vector<8x32xf32>
    %118 = arith.addf %117, %79 : vector<8x32xf32>
    %c0_58 = arith.constant 0 : index
    %c0_59 = arith.constant 0 : index
    %c0_60 = arith.constant 0 : index
    %119 = vector.load %arg19[%c0_58, %c0_59, %c0_60] : memref<1x8x32xf32, #tpu.memory_space<vmem>>, vector<1x8x32xf32>
    %120 = vector.shape_cast %119 : vector<1x8x32xf32> to vector<8x32xf32>
    %121 = vector.shape_cast %118 : vector<8x32xf32> to vector<1x8x32xf32>
    tpu.vector_store %arg19[%c0_58, %c0_59, %c0_60], %121 {strides = array<i32>} : memref<1x8x32xf32, #tpu.memory_space<vmem>>, vector<1x8x32xf32>,
    return
  }
  func.func @transform_0(%arg0: i32) -> (i32, i32, i32) {
    %c0_i32 = arith.constant 0 : i32
    %c0_i32_0 = arith.constant 0 : i32
    %c0_i32_1 = arith.constant 0 : i32
    return %arg0, %c0_i32, %c0_i32_0 : i32, i32, i32
  }
  func.func @transform_1(%arg0: i32) -> (i32, i32, i32) {
    %c0_i32 = arith.constant 0 : i32
    %c0_i32_0 = arith.constant 0 : i32
    %c0_i32_1 = arith.constant 0 : i32
    return %arg0, %c0_i32, %c0_i32_0 : i32, i32, i32
  }
  func.func @transform_2(%arg0: i32) -> (i32, i32) {
    %c0_i32 = arith.constant 0 : i32
    %c0_i32_0 = arith.constant 0 : i32
    %c0_i32_1 = arith.constant 0 : i32
    return %c0_i32, %c0_i32_0 : i32, i32
  }
  func.func @transform_3(%arg0: i32) -> (i32, i32) {
    %c0_i32 = arith.constant 0 : i32
    %c0_i32_0 = arith.constant 0 : i32
    %c0_i32_1 = arith.constant 0 : i32
    return %c0_i32, %c0_i32_0 : i32, i32
  }
  func.func @transform_4(%arg0: i32) -> (i32, i32) {
    %c0_i32 = arith.constant 0 : i32
    %c0_i32_0 = arith.constant 0 : i32
    %c0_i32_1 = arith.constant 0 : i32
    return %c0_i32, %c0_i32_0 : i32, i32
  }
  func.func @transform_5(%arg0: i32) -> (i32, i32) {
    %c0_i32 = arith.constant 0 : i32
    %c0_i32_0 = arith.constant 0 : i32
    %c0_i32_1 = arith.constant 0 : i32
    return %c0_i32, %c0_i32_0 : i32, i32
  }
  func.func @transform_6(%arg0: i32) -> (i32, i32) {
    %c0_i32 = arith.constant 0 : i32
    %c0_i32_0 = arith.constant 0 : i32
    %c0_i32_1 = arith.constant 0 : i32
    return %c0_i32, %c0_i32_0 : i32, i32
  }
  func.func @transform_7(%arg0: i32) -> (i32, i32) {
    %c0_i32 = arith.constant 0 : i32
    %c0_i32_0 = arith.constant 0 : i32
    %c0_i32_1 = arith.constant 0 : i32
    return %c0_i32, %c0_i32_0 : i32, i32
  }
  func.func @transform_8(%arg0: i32) -> (i32, i32) {
    %c0_i32 = arith.constant 0 : i32
    %c0_i32_0 = arith.constant 0 : i32
    %c0_i32_1 = arith.constant 0 : i32
    return %c0_i32, %c0_i32_0 : i32, i32
  }
  func.func @transform_9(%arg0: i32) -> (i32, i32) {
    %c0_i32 = arith.constant 0 : i32
    %c0_i32_0 = arith.constant 0 : i32
    %c0_i32_1 = arith.constant 0 : i32
    return %c0_i32, %c0_i32_0 : i32, i32
  }
  func.func @transform_10(%arg0: i32) -> (i32, i32) {
    %c0_i32 = arith.constant 0 : i32
    %c0_i32_0 = arith.constant 0 : i32
    %c0_i32_1 = arith.constant 0 : i32
    return %c0_i32, %c0_i32_0 : i32, i32
  }
  func.func @transform_11(%arg0: i32) -> (i32, i32) {
    %c0_i32 = arith.constant 0 : i32
    %c0_i32_0 = arith.constant 0 : i32
    %c0_i32_1 = arith.constant 0 : i32
    return %c0_i32, %c0_i32_0 : i32, i32
  }
  func.func @transform_12(%arg0: i32) -> (i32, i32) {
    %c0_i32 = arith.constant 0 : i32
    %c0_i32_0 = arith.constant 0 : i32
    %c0_i32_1 = arith.constant 0 : i32
    return %c0_i32, %c0_i32_0 : i32, i32
  }
  func.func @transform_13(%arg0: i32) -> (i32, i32) {
    %c0_i32 = arith.constant 0 : i32
    %c0_i32_0 = arith.constant 0 : i32
    %c0_i32_1 = arith.constant 0 : i32
    return %c0_i32, %c0_i32_0 : i32, i32
  }
  func.func @transform_14(%arg0: i32) -> (i32, i32) {
    %c0_i32 = arith.constant 0 : i32
    %c0_i32_0 = arith.constant 0 : i32
    %c0_i32_1 = arith.constant 0 : i32
    return %c0_i32, %c0_i32_0 : i32, i32
  }
  func.func @transform_15(%arg0: i32) -> (i32, i32) {
    %c0_i32 = arith.constant 0 : i32
    %c0_i32_0 = arith.constant 0 : i32
    %c0_i32_1 = arith.constant 0 : i32
    return %c0_i32, %c0_i32_0 : i32, i32
  }
  func.func @transform_16(%arg0: i32) -> (i32, i32) {
    %c0_i32 = arith.constant 0 : i32
    %c0_i32_0 = arith.constant 0 : i32
    %c0_i32_1 = arith.constant 0 : i32
    return %c0_i32, %c0_i32_0 : i32, i32
  }
  func.func @transform_17(%arg0: i32) -> (i32, i32) {
    %c0_i32 = arith.constant 0 : i32
    %c0_i32_0 = arith.constant 0 : i32
    %c0_i32_1 = arith.constant 0 : i32
    return %c0_i32, %c0_i32_0 : i32, i32
  }
  func.func @transform_18(%arg0: i32) -> (i32, i32, i32) {
    %c0_i32 = arith.constant 0 : i32
    %c0_i32_0 = arith.constant 0 : i32
    %c0_i32_1 = arith.constant 0 : i32
    return %arg0, %c0_i32, %c0_i32_0 : i32, i32, i32
  }
}

</mosaic_0001>

<llo_original>
// kernel: tpu_custom_call.1
$region0: #{tpu_custom_call.1}
  #allocation0 [shape = 'u32[]', space=smem, size = 0x4, offset = 0x4, fixed_abs, tag = 'smem constant byte address 0x4 - core index']
  #allocation1 [shape = 'u32[72,128]{1,0:T(1,128)}', space=vmem, size = 0x9000, scoped, tag = 'internal scratch']
  %s0 = inlined_call_operand.vmem [shape: f32[2,8,32], index: 0, kind: input, shape index: {}]
  %s1 = inlined_call_operand.vmem [shape: f32[2,8,32], index: 1, kind: input, shape index: {}]
  %s2 = inlined_call_operand.vmem [shape: f32[1,32], index: 2, kind: input, shape index: {}]
  %s3 = inlined_call_operand.vmem [shape: f32[1,32], index: 3, kind: input, shape index: {}]
  %s4 = inlined_call_operand.vmem [shape: f32[1,32], index: 4, kind: input, shape index: {}]
  %s5 = inlined_call_operand.vmem [shape: f32[1,32], index: 5, kind: input, shape index: {}]
  %s6 = inlined_call_operand.vmem [shape: bf16[32,32], index: 6, kind: input, shape index: {}]
  %s7 = inlined_call_operand.hbm [shape: bf16[32,32], index: 7, kind: input, shape index: {}]
  %s8 = inlined_call_operand.hbm [shape: bf16[32,32], index: 8, kind: input, shape index: {}]
  %s9 = inlined_call_operand.vmem [shape: f32[1,32], index: 9, kind: input, shape index: {}]
  %s10 = inlined_call_operand.vmem [shape: f32[1,32], index: 10, kind: input, shape index: {}]
  %s11 = inlined_call_operand.vmem [shape: f32[1,32], index: 11, kind: input, shape index: {}]
  %s12 = inlined_call_operand.hbm [shape: bf16[32,32], index: 12, kind: input, shape index: {}]
  %s13 = inlined_call_operand.vmem [shape: f32[1,32], index: 13, kind: input, shape index: {}]
  %s14 = inlined_call_operand.hbm [shape: bf16[32,64], index: 14, kind: input, shape index: {}]
  %s15 = inlined_call_operand.vmem [shape: f32[1,64], index: 15, kind: input, shape index: {}]
  %s16 = inlined_call_operand.vmem [shape: bf16[64,32], index: 16, kind: input, shape index: {}]
  %s17 = inlined_call_operand.vmem [shape: f32[1,32], index: 17, kind: input, shape index: {}]
  %s18 = inlined_call_operand.hbm [shape: f32[2,8,32], index: 18, kind: output, shape index: {}]
  %s19 = sld [smem:[#allocation0]]
  $region121: #{tpu_custom_call.1} parent=0
    _
  %s21 = ssub.s32 1, %s19
  %s22 = scalar_select 0, %s21, %s19
  $region1: #{tpu_custom_call.1} parent=0
    #allocation2 [shape = 'u8[8192]{0}', space=vmem, size = 0x2000, scoped, tag = 'input window, operand 7, single buffered']
    #allocation3 [shape = 's32[2]{0}', space=sflag, size = 0x8, scoped, tag = 'scoped memory for tpu_custom_call.1']
    #allocation4 [shape = 's32[2]{0}', space=sflag, size = 0x8, scoped, tag = 'scoped memory for tpu_custom_call.1']
    #allocation5 [shape = 'u8[8192]{0}', space=vmem, size = 0x2000, scoped, tag = 'input window, operand 8, single buffered']
    #allocation6 [shape = 's32[1]{0}', space=sflag, size = 0x4, scoped, tag = 'scoped memory for tpu_custom_call.1']
    #allocation7 [shape = 'u8[8192]{0}', space=vmem, size = 0x2000, scoped, tag = 'input window, operand 12, single buffered']
    #allocation8 [shape = 'u8[8192]{0}', space=vmem, size = 0x2000, scoped, tag = 'input window, operand 14, single buffered']
    #allocation9 [shape = 's32[1]{0}', space=sflag, size = 0x4, scoped, tag = 'scoped memory for tpu_custom_call.1']
    #allocation10 [shape = 'u8[8192]{0}', space=vmem, size = 0x2000, scoped, tag = 'output window, operand 0']
    %23 = vsyncpa [#allocation3], 0
    %24 = vsyncpa [#allocation6], 0
    %25 = vsyncpa [#allocation9], 0
    %26 = vsyncpa [#allocation4], 0
    %s27 = scalar_lea.sflag [#allocation4], 1
    %28 = vsyncpa %s27, 0
    loop: start=0, step=1, limit=4
    $region2: #{tpu_custom_call.1} parent=1 // loop_pre_header
      _
    $region3: #{tpu_custom_call.1} parent=1 // loop_header
      %s30 = sphi 0, %s34
      %p31 = scmp.ge.s32.totalorder %s30, 4
      %s40 = sphi 0, %s42
      %s43 = sphi 0, %s40
      %s44 = sphi 0, %s43
      %s60 = sphi 0, %s44
      %s66 = sphi 0, %s68
      %s69 = sphi 0, %s66
      %s70 = sphi 0, %s69
      %s86 = sphi 0, %s70
      %s90 = sphi 0, %s90
      %s92 = sphi 0, %s90
      %s93 = sphi 0, %s92
      %s107 = sphi 0, %s93
      %s111 = sphi 0, %s111
      %s113 = sphi 0, %s111
      %s114 = sphi 0, %s113
      %s128 = sphi 0, %s114
      %s132 = sphi 0, %s132
      %s134 = sphi 0, %s132
      %s135 = sphi 0, %s134
      %s149 = sphi 0, %s135
      %s153 = sphi 0, %s153
      %s155 = sphi 0, %s153
      %s156 = sphi 0, %s155
      %s170 = sphi 0, %s156
      %s174 = sphi 0, %s174
      %s176 = sphi 0, %s174
      %s177 = sphi 0, %s176
      %s191 = sphi 0, %s177
      %s195 = sphi 0, %s195
      %s197 = sphi 0, %s195
      %s198 = sphi 0, %s197
      %s212 = sphi 0, %s198
      %s216 = sphi 0, %s216
      %s218 = sphi 0, %s216
      %s219 = sphi 0, %s218
      %s233 = sphi 0, %s219
      %s237 = sphi 0, %s237
      %s239 = sphi 0, %s237
      %s240 = sphi 0, %s239
      %s254 = sphi 0, %s240
      %s258 = sphi 0, %s258
      %s260 = sphi 0, %s258
      %s261 = sphi 0, %s260
      %s275 = sphi 0, %s261
      %s279 = sphi 0, %s279
      %s281 = sphi 0, %s279
      %s282 = sphi 0, %s281
      %s296 = sphi 0, %s282
      %s300 = sphi 0, %s300
      %s302 = sphi 0, %s300
      %s303 = sphi 0, %s302
      %s317 = sphi 0, %s303
      %s321 = sphi 0, %s321
      %s323 = sphi 0, %s321
      %s324 = sphi 0, %s323
      %s338 = sphi 0, %s324
      %s342 = sphi 0, %s342
      %s344 = sphi 0, %s342
      %s345 = sphi 0, %s344
      %s359 = sphi 0, %s345
      %s363 = sphi 0, %s363
      %s365 = sphi 0, %s363
      %s366 = sphi 0, %s365
      %s380 = sphi 0, %s366
      %s384 = sphi 0, %s384
      %s386 = sphi 0, %s384
      %s387 = sphi 0, %s386
      %s401 = sphi 0, %s387
      %s405 = sphi 0, %s405
      %s407 = sphi 0, %s405
      %s408 = sphi 0, %s407
      %s422 = sphi 0, %s408
      %s428 = sphi 0, %s430
      %s431 = sphi 0, %s428
      %s432 = sphi 0, %s431
      %s448 = sphi 0, %s432
    $region4: #{tpu_custom_call.1} parent=1 // loop_header_branch
      %33 = sbr.rel (%p31) target = $region8
    $region5: #{tpu_custom_call.1} parent=1 // loop_body
      %s35 = ssub.s32 %s30, 1
      %s36 = ssub.s32 %s30, 2
      %s37 = sadd.s32 %s30, 1
      %s38 = ssub.s32 %s30, %s37
      %p39 = scmp.eq.s32.totalorder %s38, 0
      %s41 = sadd.s32 %s40, 1
      %s42 = scalar_select %p39, %s40, %s41
      %p45 = pneg %p39
      %p46 = scmp.eq.s32.totalorder %s30, 1
      %p47 = por %p45, %p46
      %p48 = scmp.ne.s32.totalorder %s40, %s43
      %p49 = scmp.eq.s32.totalorder %s30, 0
      %p50 = por %p48, %p49
      %p51 = scmp.ne.s32.totalorder %s40, %s43
      %p52 = scmp.eq.s32.totalorder %s35, 1
      %p53 = por %p51, %p52
      %p54 = scmp.ne.s32.totalorder %s43, %s44
      %p55 = scmp.eq.s32.totalorder %s35, 0
      %p56 = por %p54, %p55
      %p57 = scmp.ne.s32.totalorder %s43, %s44
      %p58 = scmp.eq.s32.totalorder %s36, 1
      %p59 = por %p57, %p58
      %p61 = scmp.ne.s32.totalorder %s44, %s60
      %p62 = scmp.eq.s32.totalorder %s36, 0
      %p63 = por %p61, %p62
      %s64 = ssub.s32 %s30, %s37
      %p65 = scmp.eq.s32.totalorder %s64, 0
      %s67 = sadd.s32 %s66, 1
      %s68 = scalar_select %p65, %s66, %s67
      %p71 = pneg %p65
      %p72 = scmp.eq.s32.totalorder %s30, 1
      %p73 = por %p71, %p72
      %p74 = scmp.ne.s32.totalorder %s66, %s69
      %p75 = scmp.eq.s32.totalorder %s30, 0
      %p76 = por %p74, %p75
      %p77 = scmp.ne.s32.totalorder %s66, %s69
      %p78 = scmp.eq.s32.totalorder %s35, 1
      %p79 = por %p77, %p78
      %p80 = scmp.ne.s32.totalorder %s69, %s70
      %p81 = scmp.eq.s32.totalorder %s35, 0
      %p82 = por %p80, %p81
      %p83 = scmp.ne.s32.totalorder %s69, %s70
      %p84 = scmp.eq.s32.totalorder %s36, 1
      %p85 = por %p83, %p84
      %p87 = scmp.ne.s32.totalorder %s70, %s86
      %p88 = scmp.eq.s32.totalorder %s36, 0
      %p89 = por %p87, %p88
      %s91 = sadd.s32 %s90, 1
      %p94 = scmp.eq.s32.totalorder %s30, 1
      %p95 = scmp.ne.s32.totalorder %s90, %s92
      %p96 = scmp.eq.s32.totalorder %s30, 0
      %p97 = por %p95, %p96
      %p98 = scmp.ne.s32.totalorder %s90, %s92
      %p99 = scmp.eq.s32.totalorder %s35, 1
      %p100 = por %p98, %p99
      %p101 = scmp.ne.s32.totalorder %s92, %s93
      %p102 = scmp.eq.s32.totalorder %s35, 0
      %p103 = por %p101, %p102
      %p104 = scmp.ne.s32.totalorder %s92, %s93
      %p105 = scmp.eq.s32.totalorder %s36, 1
      %p106 = por %p104, %p105
      %p108 = scmp.ne.s32.totalorder %s93, %s107
      %p109 = scmp.eq.s32.totalorder %s36, 0
      %p110 = por %p108, %p109
      %s112 = sadd.s32 %s111, 1
      %p115 = scmp.eq.s32.totalorder %s30, 1
      %p116 = scmp.ne.s32.totalorder %s111, %s113
      %p117 = scmp.eq.s32.totalorder %s30, 0
      %p118 = por %p116, %p117
      %p119 = scmp.ne.s32.totalorder %s111, %s113
      %p120 = scmp.eq.s32.totalorder %s35, 1
      %p121 = por %p119, %p120
      %p122 = scmp.ne.s32.totalorder %s113, %s114
      %p123 = scmp.eq.s32.totalorder %s35, 0
      %p124 = por %p122, %p123
      %p125 = scmp.ne.s32.totalorder %s113, %s114
      %p126 = scmp.eq.s32.totalorder %s36, 1
      %p127 = por %p125, %p126
      %p129 = scmp.ne.s32.totalorder %s114, %s128
      %p130 = scmp.eq.s32.totalorder %s36, 0
      %p131 = por %p129, %p130
      %s133 = sadd.s32 %s132, 1
      %p136 = scmp.eq.s32.totalorder %s30, 1
      %p137 = scmp.ne.s32.totalorder %s132, %s134
      %p138 = scmp.eq.s32.totalorder %s30, 0
      %p139 = por %p137, %p138
      %p140 = scmp.ne.s32.totalorder %s132, %s134
      %p141 = scmp.eq.s32.totalorder %s35, 1
      %p142 = por %p140, %p141
      %p143 = scmp.ne.s32.totalorder %s134, %s135
      %p144 = scmp.eq.s32.totalorder %s35, 0
      %p145 = por %p143, %p144
      %p146 = scmp.ne.s32.totalorder %s134, %s135
      %p147 = scmp.eq.s32.totalorder %s36, 1
      %p148 = por %p146, %p147
      %p150 = scmp.ne.s32.totalorder %s135, %s149
      %p151 = scmp.eq.s32.totalorder %s36, 0
      %p152 = por %p150, %p151
      %s154 = sadd.s32 %s153, 1
      %p157 = scmp.eq.s32.totalorder %s30, 1
      %p158 = scmp.ne.s32.totalorder %s153, %s155
      %p159 = scmp.eq.s32.totalorder %s30, 0
      %p160 = por %p158, %p159
      %p161 = scmp.ne.s32.totalorder %s153, %s155
      %p162 = scmp.eq.s32.totalorder %s35, 1
      %p163 = por %p161, %p162
      %p164 = scmp.ne.s32.totalorder %s155, %s156
      %p165 = scmp.eq.s32.totalorder %s35, 0
      %p166 = por %p164, %p165
      %p167 = scmp.ne.s32.totalorder %s155, %s156
      %p168 = scmp.eq.s32.totalorder %s36, 1
      %p169 = por %p167, %p168
      %p171 = scmp.ne.s32.totalorder %s156, %s170
      %p172 = scmp.eq.s32.totalorder %s36, 0
      %p173 = por %p171, %p172
      %s175 = sadd.s32 %s174, 1
      %p178 = scmp.eq.s32.totalorder %s30, 1
      %p179 = scmp.ne.s32.totalorder %s174, %s176
      %p180 = scmp.eq.s32.totalorder %s30, 0
      %p181 = por %p179, %p180
      %p182 = scmp.ne.s32.totalorder %s174, %s176
      %p183 = scmp.eq.s32.totalorder %s35, 1
      %p184 = por %p182, %p183
      %p185 = scmp.ne.s32.totalorder %s176, %s177
      %p186 = scmp.eq.s32.totalorder %s35, 0
      %p187 = por %p185, %p186
      %p188 = scmp.ne.s32.totalorder %s176, %s177
      %p189 = scmp.eq.s32.totalorder %s36, 1
      %p190 = por %p188, %p189
      %p192 = scmp.ne.s32.totalorder %s177, %s191
      %p193 = scmp.eq.s32.totalorder %s36, 0
      %p194 = por %p192, %p193
      %s196 = sadd.s32 %s195, 1
      %p199 = scmp.eq.s32.totalorder %s30, 1
      %p200 = scmp.ne.s32.totalorder %s195, %s197
      %p201 = scmp.eq.s32.totalorder %s30, 0
      %p202 = por %p200, %p201
      %p203 = scmp.ne.s32.totalorder %s195, %s197
      %p204 = scmp.eq.s32.totalorder %s35, 1
      %p205 = por %p203, %p204
      %p206 = scmp.ne.s32.totalorder %s197, %s198
      %p207 = scmp.eq.s32.totalorder %s35, 0
      %p208 = por %p206, %p207
      %p209 = scmp.ne.s32.totalorder %s197, %s198
      %p210 = scmp.eq.s32.totalorder %s36, 1
      %p211 = por %p209, %p210
      %p213 = scmp.ne.s32.totalorder %s198, %s212
      %p214 = scmp.eq.s32.totalorder %s36, 0
      %p215 = por %p213, %p214
      %s217 = sadd.s32 %s216, 1
      %p220 = scmp.eq.s32.totalorder %s30, 1
      %p221 = scmp.ne.s32.totalorder %s216, %s218
      %p222 = scmp.eq.s32.totalorder %s30, 0
      %p223 = por %p221, %p222
      %p224 = scmp.ne.s32.totalorder %s216, %s218
      %p225 = scmp.eq.s32.totalorder %s35, 1
      %p226 = por %p224, %p225
      %p227 = scmp.ne.s32.totalorder %s218, %s219
      %p228 = scmp.eq.s32.totalorder %s35, 0
      %p229 = por %p227, %p228
      %p230 = scmp.ne.s32.totalorder %s218, %s219
      %p231 = scmp.eq.s32.totalorder %s36, 1
      %p232 = por %p230, %p231
      %p234 = scmp.ne.s32.totalorder %s219, %s233
      %p235 = scmp.eq.s32.totalorder %s36, 0
      %p236 = por %p234, %p235
      %s238 = sadd.s32 %s237, 1
      %p241 = scmp.eq.s32.totalorder %s30, 1
      %p242 = scmp.ne.s32.totalorder %s237, %s239
      %p243 = scmp.eq.s32.totalorder %s30, 0
      %p244 = por %p242, %p243
      %p245 = scmp.ne.s32.totalorder %s237, %s239
      %p246 = scmp.eq.s32.totalorder %s35, 1
      %p247 = por %p245, %p246
      %p248 = scmp.ne.s32.totalorder %s239, %s240
      %p249 = scmp.eq.s32.totalorder %s35, 0
      %p250 = por %p248, %p249
      %p251 = scmp.ne.s32.totalorder %s239, %s240
      %p252 = scmp.eq.s32.totalorder %s36, 1
      %p253 = por %p251, %p252
      %p255 = scmp.ne.s32.totalorder %s240, %s254
      %p256 = scmp.eq.s32.totalorder %s36, 0
      %p257 = por %p255, %p256
      %s259 = sadd.s32 %s258, 1
      %p262 = scmp.eq.s32.totalorder %s30, 1
      %p263 = scmp.ne.s32.totalorder %s258, %s260
      %p264 = scmp.eq.s32.totalorder %s30, 0
      %p265 = por %p263, %p264
      %p266 = scmp.ne.s32.totalorder %s258, %s260
      %p267 = scmp.eq.s32.totalorder %s35, 1
      %p268 = por %p266, %p267
      %p269 = scmp.ne.s32.totalorder %s260, %s261
      %p270 = scmp.eq.s32.totalorder %s35, 0
      %p271 = por %p269, %p270
      %p272 = scmp.ne.s32.totalorder %s260, %s261
      %p273 = scmp.eq.s32.totalorder %s36, 1
      %p274 = por %p272, %p273
      %p276 = scmp.ne.s32.totalorder %s261, %s275
      %p277 = scmp.eq.s32.totalorder %s36, 0
      %p278 = por %p276, %p277
      %s280 = sadd.s32 %s279, 1
      %p283 = scmp.eq.s32.totalorder %s30, 1
      %p284 = scmp.ne.s32.totalorder %s279, %s281
      %p285 = scmp.eq.s32.totalorder %s30, 0
      %p286 = por %p284, %p285
      %p287 = scmp.ne.s32.totalorder %s279, %s281
      %p288 = scmp.eq.s32.totalorder %s35, 1
      %p289 = por %p287, %p288
      %p290 = scmp.ne.s32.totalorder %s281, %s282
      %p291 = scmp.eq.s32.totalorder %s35, 0
      %p292 = por %p290, %p291
      %p293 = scmp.ne.s32.totalorder %s281, %s282
      %p294 = scmp.eq.s32.totalorder %s36, 1
      %p295 = por %p293, %p294
      %p297 = scmp.ne.s32.totalorder %s282, %s296
      %p298 = scmp.eq.s32.totalorder %s36, 0
      %p299 = por %p297, %p298
      %s301 = sadd.s32 %s300, 1
      %p304 = scmp.eq.s32.totalorder %s30, 1
      %p305 = scmp.ne.s32.totalorder %s300, %s302
      %p306 = scmp.eq.s32.totalorder %s30, 0
      %p307 = por %p305, %p306
      %p308 = scmp.ne.s32.totalorder %s300, %s302
      %p309 = scmp.eq.s32.totalorder %s35, 1
      %p310 = por %p308, %p309
      %p311 = scmp.ne.s32.totalorder %s302, %s303
      %p312 = scmp.eq.s32.totalorder %s35, 0
      %p313 = por %p311, %p312
      %p314 = scmp.ne.s32.totalorder %s302, %s303
      %p315 = scmp.eq.s32.totalorder %s36, 1
      %p316 = por %p314, %p315
      %p318 = scmp.ne.s32.totalorder %s303, %s317
      %p319 = scmp.eq.s32.totalorder %s36, 0
      %p320 = por %p318, %p319
      %s322 = sadd.s32 %s321, 1
      %p325 = scmp.eq.s32.totalorder %s30, 1
      %p326 = scmp.ne.s32.totalorder %s321, %s323
      %p327 = scmp.eq.s32.totalorder %s30, 0
      %p328 = por %p326, %p327
      %p329 = scmp.ne.s32.totalorder %s321, %s323
      %p330 = scmp.eq.s32.totalorder %s35, 1
      %p331 = por %p329, %p330
      %p332 = scmp.ne.s32.totalorder %s323, %s324
      %p333 = scmp.eq.s32.totalorder %s35, 0
      %p334 = por %p332, %p333
      %p335 = scmp.ne.s32.totalorder %s323, %s324
      %p336 = scmp.eq.s32.totalorder %s36, 1
      %p337 = por %p335, %p336
      %p339 = scmp.ne.s32.totalorder %s324, %s338
      %p340 = scmp.eq.s32.totalorder %s36, 0
      %p341 = por %p339, %p340
      %s343 = sadd.s32 %s342, 1
      %p346 = scmp.eq.s32.totalorder %s30, 1
      %p347 = scmp.ne.s32.totalorder %s342, %s344
      %p348 = scmp.eq.s32.totalorder %s30, 0
      %p349 = por %p347, %p348
      %p350 = scmp.ne.s32.totalorder %s342, %s344
      %p351 = scmp.eq.s32.totalorder %s35, 1
      %p352 = por %p350, %p351
      %p353 = scmp.ne.s32.totalorder %s344, %s345
      %p354 = scmp.eq.s32.totalorder %s35, 0
      %p355 = por %p353, %p354
      %p356 = scmp.ne.s32.totalorder %s344, %s345
      %p357 = scmp.eq.s32.totalorder %s36, 1
      %p358 = por %p356, %p357
      %p360 = scmp.ne.s32.totalorder %s345, %s359
      %p361 = scmp.eq.s32.totalorder %s36, 0
      %p362 = por %p360, %p361
      %s364 = sadd.s32 %s363, 1
      %p367 = scmp.eq.s32.totalorder %s30, 1
      %p368 = scmp.ne.s32.totalorder %s363, %s365
      %p369 = scmp.eq.s32.totalorder %s30, 0
      %p370 = por %p368, %p369
      %p371 = scmp.ne.s32.totalorder %s363, %s365
      %p372 = scmp.eq.s32.totalorder %s35, 1
      %p373 = por %p371, %p372
      %p374 = scmp.ne.s32.totalorder %s365, %s366
      %p375 = scmp.eq.s32.totalorder %s35, 0
      %p376 = por %p374, %p375
      %p377 = scmp.ne.s32.totalorder %s365, %s366
      %p378 = scmp.eq.s32.totalorder %s36, 1
      %p379 = por %p377, %p378
      %p381 = scmp.ne.s32.totalorder %s366, %s380
      %p382 = scmp.eq.s32.totalorder %s36, 0
      %p383 = por %p381, %p382
      %s385 = sadd.s32 %s384, 1
      %p388 = scmp.eq.s32.totalorder %s30, 1
      %p389 = scmp.ne.s32.totalorder %s384, %s386
      %p390 = scmp.eq.s32.totalorder %s30, 0
      %p391 = por %p389, %p390
      %p392 = scmp.ne.s32.totalorder %s384, %s386
      %p393 = scmp.eq.s32.totalorder %s35, 1
      %p394 = por %p392, %p393
      %p395 = scmp.ne.s32.totalorder %s386, %s387
      %p396 = scmp.eq.s32.totalorder %s35, 0
      %p397 = por %p395, %p396
      %p398 = scmp.ne.s32.totalorder %s386, %s387
      %p399 = scmp.eq.s32.totalorder %s36, 1
      %p400 = por %p398, %p399
      %p402 = scmp.ne.s32.totalorder %s387, %s401
      %p403 = scmp.eq.s32.totalorder %s36, 0
      %p404 = por %p402, %p403
      %s406 = sadd.s32 %s405, 1
      %p409 = scmp.eq.s32.totalorder %s30, 1
      %p410 = scmp.ne.s32.totalorder %s405, %s407
      %p411 = scmp.eq.s32.totalorder %s30, 0
      %p412 = por %p410, %p411
      %p413 = scmp.ne.s32.totalorder %s405, %s407
      %p414 = scmp.eq.s32.totalorder %s35, 1
      %p415 = por %p413, %p414
      %p416 = scmp.ne.s32.totalorder %s407, %s408
      %p417 = scmp.eq.s32.totalorder %s35, 0
      %p418 = por %p416, %p417
      %p419 = scmp.ne.s32.totalorder %s407, %s408
      %p420 = scmp.eq.s32.totalorder %s36, 1
      %p421 = por %p419, %p420
      %p423 = scmp.ne.s32.totalorder %s408, %s422
      %p424 = scmp.eq.s32.totalorder %s36, 0
      %p425 = por %p423, %p424
      %s426 = ssub.s32 %s30, %s37
      %p427 = scmp.eq.s32.totalorder %s426, 0
      %s429 = sadd.s32 %s428, 1
      %s430 = scalar_select %p427, %s428, %s429
      %p433 = pneg %p427
      %p434 = scmp.eq.s32.totalorder %s30, 1
      %p435 = por %p433, %p434
      %p436 = scmp.ne.s32.totalorder %s428, %s431
      %p437 = scmp.eq.s32.totalorder %s30, 0
      %p438 = por %p436, %p437
      %p439 = scmp.ne.s32.totalorder %s428, %s431
      %p440 = scmp.eq.s32.totalorder %s35, 1
      %p441 = por %p439, %p440
      %p442 = scmp.ne.s32.totalorder %s431, %s432
      %p443 = scmp.eq.s32.totalorder %s35, 0
      %p444 = por %p442, %p443
      %p445 = scmp.ne.s32.totalorder %s431, %s432
      %p446 = scmp.eq.s32.totalorder %s36, 1
      %p447 = por %p445, %p446
      %p449 = scmp.ne.s32.totalorder %s432, %s448
      %p450 = scmp.eq.s32.totalorder %s36, 0
      %p451 = por %p449, %p450
      %p452 = scmp.le.s32.totalorder 1, %s30
      %p453 = scmp.lt.s32.totalorder %s30, 3
      %p454 = pnand %p452, %p453
      %p455 = pneg %p454
      // Predicated region
      $region9: #{tpu_custom_call.1} parent=5 // pred_check
        _
      $region10: #{tpu_custom_call.1} parent=5 // pred_check_branch
        %457 = sbr.rel (%p454) target = $region12
      $region11: #{tpu_custom_call.1} parent=5 // pred_region
        %s458 = ssub.s32 %s30, 1
        // Predicated region
        $region13: #{tpu_custom_call.1} parent=11 // pred_check
          %p459 = pneg %p103
        $region14: #{tpu_custom_call.1} parent=11 // pred_check_branch
          %461 = sbr.rel (%p459) target = $region16
        $region15: #{tpu_custom_call.1} parent=11 // pred_region
          _
        $region16: #{tpu_custom_call.1} parent=11 // pred_fallthru
          _
        // Predicated region
        $region17: #{tpu_custom_call.1} parent=11 // pred_check
          %p462 = pneg %p124
        $region18: #{tpu_custom_call.1} parent=11 // pred_check_branch
          %464 = sbr.rel (%p462) target = $region20
        $region19: #{tpu_custom_call.1} parent=11 // pred_region
          _
        $region20: #{tpu_custom_call.1} parent=11 // pred_fallthru
          _
        // Predicated region
        $region21: #{tpu_custom_call.1} parent=11 // pred_check
          %p465 = pneg %p145
        $region22: #{tpu_custom_call.1} parent=11 // pred_check_branch
          %467 = sbr.rel (%p465) target = $region24
        $region23: #{tpu_custom_call.1} parent=11 // pred_region
          _
        $region24: #{tpu_custom_call.1} parent=11 // pred_fallthru
          _
        // Predicated region
        $region25: #{tpu_custom_call.1} parent=11 // pred_check
          %p468 = pneg %p166
        $region26: #{tpu_custom_call.1} parent=11 // pred_check_branch
          %470 = sbr.rel (%p468) target = $region28
        $region27: #{tpu_custom_call.1} parent=11 // pred_region
          _
        $region28: #{tpu_custom_call.1} parent=11 // pred_fallthru
          _
        // Predicated region
        $region29: #{tpu_custom_call.1} parent=11 // pred_check
          %p471 = pneg %p187
        $region30: #{tpu_custom_call.1} parent=11 // pred_check_branch
          %473 = sbr.rel (%p471) target = $region32
        $region31: #{tpu_custom_call.1} parent=11 // pred_region
          _
        $region32: #{tpu_custom_call.1} parent=11 // pred_fallthru
          _
        // Predicated region
        $region33: #{tpu_custom_call.1} parent=11 // pred_check
          %p474 = pneg %p208
        $region34: #{tpu_custom_call.1} parent=11 // pred_check_branch
          %476 = sbr.rel (%p474) target = $region36
        $region35: #{tpu_custom_call.1} parent=11 // pred_region
          %478 = vsyncadd [#allocation3], 0
          %s479 = sshll.u32 %s7, 4
          %s480 = int_to_ptr.hbm [resolvable:$true] %s479
          %s481 = sshll.u32 [#allocation2], 4
          %s482 = int_to_ptr.vmem [resolvable:$true] %s481
          %487 = dma.hbm_to_vmem [thread:$0]  %s480, 256, %s482, [#allocation3], 64, 64, 4
        $region36: #{tpu_custom_call.1} parent=11 // pred_fallthru
          _
        // Predicated region
        $region37: #{tpu_custom_call.1} parent=11 // pred_check
          %p488 = pneg %p229
        $region38: #{tpu_custom_call.1} parent=11 // pred_check_branch
          %490 = sbr.rel (%p488) target = $region40
        $region39: #{tpu_custom_call.1} parent=11 // pred_region
          %492 = vsyncadd [#allocation6], 0
          %s493 = sshll.u32 %s8, 4
          %s494 = int_to_ptr.hbm [resolvable:$true] %s493
          %s495 = sshll.u32 [#allocation5], 4
          %s496 = int_to_ptr.vmem [resolvable:$true] %s495
          %501 = dma.hbm_to_vmem [thread:$0]  %s494, 256, %s496, [#allocation6], 64, 64, 4
        $region40: #{tpu_custom_call.1} parent=11 // pred_fallthru
          _
        // Predicated region
        $region41: #{tpu_custom_call.1} parent=11 // pred_check
          %p502 = pneg %p250
        $region42: #{tpu_custom_call.1} parent=11 // pred_check_branch
          %504 = sbr.rel (%p502) target = $region44
        $region43: #{tpu_custom_call.1} parent=11 // pred_region
          _
        $region44: #{tpu_custom_call.1} parent=11 // pred_fallthru
          _
        // Predicated region
        $region45: #{tpu_custom_call.1} parent=11 // pred_check
          %p505 = pneg %p271
        $region46: #{tpu_custom_call.1} parent=11 // pred_check_branch
          %507 = sbr.rel (%p505) target = $region48
        $region47: #{tpu_custom_call.1} parent=11 // pred_region
          _
        $region48: #{tpu_custom_call.1} parent=11 // pred_fallthru
          _
        // Predicated region
        $region49: #{tpu_custom_call.1} parent=11 // pred_check
          %p508 = pneg %p292
        $region50: #{tpu_custom_call.1} parent=11 // pred_check_branch
          %510 = sbr.rel (%p508) target = $region52
        $region51: #{tpu_custom_call.1} parent=11 // pred_region
          _
        $region52: #{tpu_custom_call.1} parent=11 // pred_fallthru
          _
        // Predicated region
        $region53: #{tpu_custom_call.1} parent=11 // pred_check
          %p511 = pneg %p313
        $region54: #{tpu_custom_call.1} parent=11 // pred_check_branch
          %513 = sbr.rel (%p511) target = $region56
        $region55: #{tpu_custom_call.1} parent=11 // pred_region
          %515 = vsyncadd [#allocation6], 0
          %s516 = sshll.u32 %s12, 4
          %s517 = int_to_ptr.hbm [resolvable:$true] %s516
          %s518 = sshll.u32 [#allocation7], 4
          %s519 = int_to_ptr.vmem [resolvable:$true] %s518
          %524 = dma.hbm_to_vmem [thread:$0]  %s517, 256, %s519, [#allocation6], 64, 64, 4
        $region56: #{tpu_custom_call.1} parent=11 // pred_fallthru
          _
        // Predicated region
        $region57: #{tpu_custom_call.1} parent=11 // pred_check
          %p525 = pneg %p334
        $region58: #{tpu_custom_call.1} parent=11 // pred_check_branch
          %527 = sbr.rel (%p525) target = $region60
        $region59: #{tpu_custom_call.1} parent=11 // pred_region
          _
        $region60: #{tpu_custom_call.1} parent=11 // pred_fallthru
          _
        // Predicated region
        $region61: #{tpu_custom_call.1} parent=11 // pred_check
          %p528 = pneg %p355
        $region62: #{tpu_custom_call.1} parent=11 // pred_check_branch
          %530 = sbr.rel (%p528) target = $region64
        $region63: #{tpu_custom_call.1} parent=11 // pred_region
          %532 = vsyncadd [#allocation9], 0
          %s533 = sshll.u32 %s14, 4
          %s534 = int_to_ptr.hbm [resolvable:$true] %s533
          %s535 = sshll.u32 [#allocation8], 4
          %s536 = int_to_ptr.vmem [resolvable:$true] %s535
          %541 = dma.hbm_to_vmem [thread:$0]  %s534, 256, %s536, [#allocation9], 64, 64, 4
        $region64: #{tpu_custom_call.1} parent=11 // pred_fallthru
          _
        // Predicated region
        $region65: #{tpu_custom_call.1} parent=11 // pred_check
          %p542 = pneg %p376
        $region66: #{tpu_custom_call.1} parent=11 // pred_check_branch
          %544 = sbr.rel (%p542) target = $region68
        $region67: #{tpu_custom_call.1} parent=11 // pred_region
          _
        $region68: #{tpu_custom_call.1} parent=11 // pred_fallthru
          _
        // Predicated region
        $region69: #{tpu_custom_call.1} parent=11 // pred_check
          %p545 = pneg %p397
        $region70: #{tpu_custom_call.1} parent=11 // pred_check_branch
          %547 = sbr.rel (%p545) target = $region72
        $region71: #{tpu_custom_call.1} parent=11 // pred_region
          _
        $region72: #{tpu_custom_call.1} parent=11 // pred_fallthru
          _
        // Predicated region
        $region73: #{tpu_custom_call.1} parent=11 // pred_check
          %p548 = pneg %p418
        $region74: #{tpu_custom_call.1} parent=11 // pred_check_branch
          %550 = sbr.rel (%p548) target = $region76
        $region75: #{tpu_custom_call.1} parent=11 // pred_region
          _
        $region76: #{tpu_custom_call.1} parent=11 // pred_fallthru
          _
      $region12: #{tpu_custom_call.1} parent=5 // pred_fallthru
        _
      %p551 = scmp.lt.s32.totalorder %s30, 2
      // Predicated region
      $region77: #{tpu_custom_call.1} parent=5 // pred_check
        %p552 = pneg %p551
      $region78: #{tpu_custom_call.1} parent=5 // pred_check_branch
        %554 = sbr.rel (%p552) target = $region80
      $region79: #{tpu_custom_call.1} parent=5 // pred_region
        // Predicated region
        $region81: #{tpu_custom_call.1} parent=79 // pred_check
          %p555 = pneg %p50
        $region82: #{tpu_custom_call.1} parent=79 // pred_check_branch
          %557 = sbr.rel (%p555) target = $region84
        $region83: #{tpu_custom_call.1} parent=79 // pred_region
          %p558 = scmp.lt.s32.totalorder %s30, 1
          %s559 = scalar_select %p558, %s30, 1
          %s560 = smul.addr %s559, 8
          %s561 = scalar_lea.vmem %s0, %s560
        $region84: #{tpu_custom_call.1} parent=79 // pred_fallthru
          _
        // Predicated region
        $region85: #{tpu_custom_call.1} parent=79 // pred_check
          %p562 = pneg %p76
        $region86: #{tpu_custom_call.1} parent=79 // pred_check_branch
          %564 = sbr.rel (%p562) target = $region88
        $region87: #{tpu_custom_call.1} parent=79 // pred_region
          %p565 = scmp.lt.s32.totalorder %s30, 1
          %s566 = scalar_select %p565, %s30, 1
          %s567 = smul.addr %s566, 8
          %s568 = scalar_lea.vmem %s1, %s567
        $region88: #{tpu_custom_call.1} parent=79 // pred_fallthru
          _
      $region80: #{tpu_custom_call.1} parent=5 // pred_fallthru
        _
      %p569 = scmp.le.s32.totalorder 1, %s30
      %p570 = scmp.lt.s32.totalorder %s30, 3
      %p571 = pnand %p569, %p570
      %p572 = pneg %p571
      // Predicated region
      $region89: #{tpu_custom_call.1} parent=5 // pred_check
        _
      $region90: #{tpu_custom_call.1} parent=5 // pred_check_branch
        %574 = sbr.rel (%p571) target = $region92
      $region91: #{tpu_custom_call.1} parent=5 // pred_region
        %s575 = ssub.s32 %s30, 1
        // Predicated region
        $region93: #{tpu_custom_call.1} parent=91 // pred_check
          %p576 = pneg %p208
        $region94: #{tpu_custom_call.1} parent=91 // pred_check_branch
          %578 = sbr.rel (%p576) target = $region96
        $region95: #{tpu_custom_call.1} parent=91 // pred_region
          %580 = dma.done [#allocation3], 256
        $region96: #{tpu_custom_call.1} parent=91 // pred_fallthru
          _
        // Predicated region
        $region97: #{tpu_custom_call.1} parent=91 // pred_check
          %p581 = pneg %p229
        $region98: #{tpu_custom_call.1} parent=91 // pred_check_branch
          %583 = sbr.rel (%p581) target = $region100
        $region99: #{tpu_custom_call.1} parent=91 // pred_region
          %585 = dma.done [#allocation6], 256
        $region100: #{tpu_custom_call.1} parent=91 // pred_fallthru
          _
        // Predicated region
        $region101: #{tpu_custom_call.1} parent=91 // pred_check
          %p586 = pneg %p313
        $region102: #{tpu_custom_call.1} parent=91 // pred_check_branch
          %588 = sbr.rel (%p586) target = $region104
        $region103: #{tpu_custom_call.1} parent=91 // pred_region
          %590 = dma.done [#allocation6], 256
        $region104: #{tpu_custom_call.1} parent=91 // pred_fallthru
          _
        // Predicated region
        $region105: #{tpu_custom_call.1} parent=91 // pred_check
          %p591 = pneg %p355
        $region106: #{tpu_custom_call.1} parent=91 // pred_check_branch
          %593 = sbr.rel (%p591) target = $region108
        $region107: #{tpu_custom_call.1} parent=91 // pred_region
          %595 = dma.done [#allocation9], 256
        $region108: #{tpu_custom_call.1} parent=91 // pred_fallthru
          _
        %p596 = scmp.lt.s32.totalorder %s35, 1
        %s597 = scalar_select %p596, %s35, 1
        %s598 = smul.addr %s597, 8
        %s599 = scalar_lea.vmem %s0, %s598
        %p600 = pneg %p56
        %p601 = pneg %p53
        %p602 = scmp.lt.s32.totalorder %s35, 1
        %s603 = scalar_select %p602, %s35, 1
        %s604 = smul.addr %s603, 8
        %s605 = scalar_lea.vmem %s1, %s604
        %p606 = pneg %p82
        %p607 = pneg %p79
        %p608 = pneg %p103
        %p609 = pneg %p100
        %p610 = pneg %p124
        %p611 = pneg %p121
        %p612 = pneg %p145
        %p613 = pneg %p142
        %p614 = pneg %p166
        %p615 = pneg %p163
        %p616 = pneg %p187
        %p617 = pneg %p184
        %p618 = pneg %p208
        %p619 = pneg %p205
        %p620 = pneg %p229
        %p621 = pneg %p226
        %p622 = pneg %p250
        %p623 = pneg %p247
        %p624 = pneg %p271
        %p625 = pneg %p268
        %p626 = pneg %p292
        %p627 = pneg %p289
        %p628 = pneg %p313
        %p629 = pneg %p310
        %p630 = pneg %p334
        %p631 = pneg %p331
        %p632 = pneg %p355
        %p633 = pneg %p352
        %p634 = pneg %p376
        %p635 = pneg %p373
        %p636 = pneg %p397
        %p637 = pneg %p394
        %p638 = pneg %p418
        %p639 = pneg %p415
        %p640 = pneg %p444
        %p641 = pneg %p441
        %s642 = sand.u32 %s431, 1
        %s643 = scalar_lea.sflag [#allocation4], %s642
        %s644 = sand.u32 %s431, 1
        %s645 = smul.addr %s644, 8
        %s646 = scalar_lea.vmem [#allocation10], %s645
        %p647 = scmp.lt.s32.totalorder %s35, 1
        %s648 = scalar_select %p647, %s35, 1
        %s649 = smul.addr %s648, 8
        %s650 = scalar_lea.vmem %s0, %s649
        %p651 = scmp.lt.s32.totalorder %s35, 1
        %s652 = scalar_select %p651, %s35, 1
        %s653 = smul.addr %s652, 8
        %s654 = scalar_lea.vmem %s1, %s653
        %v656 = vld [vmem:[%s650] sm:$0xff]
        %v657 = vld [vmem:[%s654] sm:$0xff]
        %v658 = vld [vmem:[%s2] sm:$0x1]
        %v659 = vld [vmem:[%s3] sm:$0x1]
        %vm660 = vcmask 261120
        %v661 = vsel %vm660, %v656, 0.0
        %662 = vadd.xlane.f32.xlu0 %v661
        %v663 = vpop.xlane.xlu0 %662
        %v664 = vrcp.pop 32.0
        %v665 = vmul.f32 32.0, %v664
        %v666 = vsub.f32 1.0, %v665
        %v667 = vmul.f32 %v664, %v666
        %v668 = vadd.f32 %v664, %v667
        %vm669 = vweird.f32 %v664
        %v670 = vsel %vm669, %v664, %v668
        %v671 = vmul.f32 %v663, %v670
        %v672 = vsub.f32 %v656, %v671
        %v673 = vmul.f32 %v672, %v672
        %v674 = vsel %vm660, %v673, 0.0
        %675 = vadd.xlane.f32.xlu0 %v674
        %v676 = vpop.xlane.xlu0 %675
        %v677 = vmul.f32 %v676, %v670
        %v678 = vadd.f32 %v677, 1e-05
        %v679 = vrsqrt.pop %v678
        %v680 = vmul.f32 %v679, %v678
        %v681 = vmul.f32 %v680, %v679
        %v682 = vmul.f32 0.5, %v681
        %v683 = vsub.f32 1.5, %v682
        %v684 = vmul.f32 %v679, %v683
        %vm685 = vweird.f32 %v678
        %vm686 = vweird.f32 %v679
        %vm687 = vmor %vm685, %vm686
        %v688 = vsel %vm687, %v679, %v684
        %v689 = vmul.f32 %v672, %v688
        %v691 = vperm.slane %v658, 0
        %v693 = vmul.f32 %v689, %v691
        %v695 = vperm.slane %v659, 0
        %v697 = vadd.f32 %v693, %v695
        %v698 = vadd.f32 %v697, %v657
        %v699 = vpack.c.bf16 %v698, %v698
        %v700 = vld [vmem:[%s6] sm:$0xf]
        %v701 = vld [vmem:[%s6 + $0x4] sm:$0xf]
        %v702 = vld [vmem:[%s6 + $0x8] sm:$0xf]
        %v703 = vld [vmem:[%s6 + $0xc] sm:$0xf]
        %v704 = vld [vmem:[%s9] sm:$0x1]
        %v706 = vperm.slane %v704, 0
        %v712 = vunpack.c.l.b16 %v700
        %v713 = vunpack.c.l.b16 %v701
        %v714 = vunpack.c.l.b16 %v702
        %v715 = vunpack.c.l.b16 %v703
        %v716 = vpack.c.b16 %v713, %v712
        %v717 = vpack.c.b16 %v715, %v714
        %v721 = vsel %vm660, %v699, 0
        %723 = vmatpush.bf16.msra.mxu0 0
        %724 = vmatpush.bf16.msra.mxu0 0
        %725 = vmatpush.bf16.msra.mxu0 0
        %726 = vmatpush.bf16.msra.mxu0 0
        %727 = vmatpush.bf16.msra.mxu0 0
        %728 = vmatpush.bf16.msra.mxu0 0
        %729 = vmatpush.bf16.msra.mxu0 %v717
        %730 = vmatpush.bf16.msra.mxu0 %v716
        %731 = vmatmul.bf16.gmra.mxu0 %v721
        %v732 = vpop.f32.mrf.mxu0
        %v733 = vadd.f32 %v706, %v732
        %v734 = vpop.f32.mrf.mxu0
        %735 = vdwg.mxu0
        %v736 = vld [vmem:[#allocation2] sm:$0xf]
        %v737 = vld [vmem:[#allocation2 + $0x4] sm:$0xf]
        %v738 = vld [vmem:[#allocation2 + $0x8] sm:$0xf]
        %v739 = vld [vmem:[#allocation2 + $0xc] sm:$0xf]
        %v740 = vld [vmem:[%s10] sm:$0x1]
        %v742 = vperm.slane %v740, 0
        %v748 = vunpack.c.l.b16 %v736
        %v749 = vunpack.c.l.b16 %v737
        %v750 = vunpack.c.l.b16 %v738
        %v751 = vunpack.c.l.b16 %v739
        %v752 = vpack.c.b16 %v749, %v748
        %v753 = vpack.c.b16 %v751, %v750
        %756 = vmatpush.bf16.msra.mxu0 0
        %757 = vmatpush.bf16.msra.mxu0 0
        %758 = vmatpush.bf16.msra.mxu0 0
        %759 = vmatpush.bf16.msra.mxu0 0
        %760 = vmatpush.bf16.msra.mxu0 0
        %761 = vmatpush.bf16.msra.mxu0 0
        %762 = vmatpush.bf16.msra.mxu0 %v753
        %763 = vmatpush.bf16.msra.mxu0 %v752
        %764 = vmatmul.bf16.gmra.mxu0 %v721
        %v765 = vpop.f32.mrf.mxu0
        %v766 = vadd.f32 %v742, %v765
        %v767 = vpop.f32.mrf.mxu0
        %768 = vdwg.mxu0
        %v769 = vpack.c.bf16 %v697, %v697
        %v770 = vld [vmem:[#allocation5] sm:$0xf]
        %v771 = vld [vmem:[#allocation5 + $0x4] sm:$0xf]
        %v772 = vld [vmem:[#allocation5 + $0x8] sm:$0xf]
        %v773 = vld [vmem:[#allocation5 + $0xc] sm:$0xf]
        %v774 = vld [vmem:[%s11] sm:$0x1]
        %v776 = vperm.slane %v774, 0
        %v782 = vunpack.c.l.b16 %v770
        %v783 = vunpack.c.l.b16 %v771
        %v784 = vunpack.c.l.b16 %v772
        %v785 = vunpack.c.l.b16 %v773
        %v786 = vpack.c.b16 %v783, %v782
        %v787 = vpack.c.b16 %v785, %v784
        %v791 = vsel %vm660, %v769, 0
        %793 = vmatpush.bf16.msra.mxu0 0
        %794 = vmatpush.bf16.msra.mxu0 0
        %795 = vmatpush.bf16.msra.mxu0 0
        %796 = vmatpush.bf16.msra.mxu0 0
        %797 = vmatpush.bf16.msra.mxu0 0
        %798 = vmatpush.bf16.msra.mxu0 0
        %799 = vmatpush.bf16.msra.mxu0 %v787
        %800 = vmatpush.bf16.msra.mxu0 %v786
        %801 = vmatmul.bf16.gmra.mxu0 %v791
        %v802 = vpop.f32.mrf.mxu0
        %v803 = vadd.f32 %v776, %v802
        %v804 = vpop.f32.mrf.mxu0
        %805 = vdwg.mxu0
        %v806 = vmul.f32 %v733, 0.35355338
        %808 = vrot.lane.b32.xlu0 %v806, 120
        %v809 = vpop.permute.xlu0 %808
        %811 = vrot.lane.b32.xlu0 %v806, 112
        %v812 = vpop.permute.xlu0 %811
        %814 = vrot.lane.b32.xlu0 %v806, 104
        %v815 = vpop.permute.xlu0 %814
        %v817 = vrot.slane %v812, 4
        %vm818 = vcmask 1047556
        %v819 = vsel %vm818, %v817, %v806
        %v820 = vrot.slane %v806, 4
        %v821 = vsel %vm818, %v812, %v820
        %v823 = vunpack.c.l.s4 1983009808
        %v824 = vunpack.c.0.s8 %v823
        %v825 = vperm.slane %v819, %v824
        %v827 = vunpack.c.l.s4 1983009808
        %v828 = vunpack.c.0.s8 %v827
        %v829 = vperm.slane %v821, %v828
        %v830 = vrot.slane %v815, 4
        %v831 = vsel %vm818, %v830, %v809
        %v832 = vrot.slane %v809, 4
        %v833 = vsel %vm818, %v815, %v832
        %v835 = vunpack.c.l.s4 1983009808
        %v836 = vunpack.c.0.s8 %v835
        %v837 = vperm.slane %v831, %v836
        %v839 = vunpack.c.l.s4 1983009808
        %v840 = vunpack.c.0.s8 %v839
        %v841 = vperm.slane %v833, %v840
        %v842 = vrot.slane %v837, 4
        %v843 = vsel %vm818, %v842, %v825
        %v844 = vrot.slane %v825, 4
        %v845 = vsel %vm818, %v837, %v844
        %v847 = vunpack.c.l.s4 1934713408
        %v848 = vunpack.c.0.s8 %v847
        %v849 = vperm.slane %v843, %v848
        %v851 = vunpack.c.l.s4 1934713408
        %v852 = vunpack.c.0.s8 %v851
        %v853 = vperm.slane %v845, %v852
        %v854 = vrot.slane %v841, 4
        %v855 = vsel %vm818, %v854, %v829
        %v856 = vrot.slane %v829, 4
        %v857 = vsel %vm818, %v841, %v856
        %v859 = vunpack.c.l.s4 1934713408
        %v860 = vunpack.c.0.s8 %v859
        %v861 = vperm.slane %v855, %v860
        %v863 = vunpack.c.l.s4 1934713408
        %v864 = vunpack.c.0.s8 %v863
        %v865 = vperm.slane %v857, %v864
        %v866 = vrot.slane %v849, 4
        %v867 = vsel %vm818, 0.0, %v866
        %v868 = vrot.slane %v853, 4
        %v869 = vsel %vm818, 0.0, %v868
        %v870 = vrot.slane %v861, 4
        %v871 = vsel %vm818, 0.0, %v870
        %v872 = vrot.slane %v865, 4
        %v873 = vsel %vm818, 0.0, %v872
        %v874 = vsel %vm818, %v868, %v849
        %v876 = vunpack.c.l.s4 1983009808
        %v877 = vunpack.c.0.s8 %v876
        %v878 = vperm.slane %v874, %v877
        %v879 = vrot.slane %v869, 4
        %v880 = vsel %vm818, %v879, %v867
        %v882 = vunpack.c.l.s4 1983009808
        %v883 = vunpack.c.0.s8 %v882
        %v884 = vperm.slane %v880, %v883
        %v885 = vsel %vm818, %v872, %v861
        %v887 = vunpack.c.l.s4 1983009808
        %v888 = vunpack.c.0.s8 %v887
        %v889 = vperm.slane %v885, %v888
        %v890 = vrot.slane %v873, 4
        %v891 = vsel %vm818, %v890, %v871
        %v893 = vunpack.c.l.s4 1983009808
        %v894 = vunpack.c.0.s8 %v893
        %v895 = vperm.slane %v891, %v894
        %v896 = vrot.slane %v884, 4
        %v897 = vsel %vm818, %v896, %v878
        %v898 = vrot.slane %v878, 4
        %v899 = vsel %vm818, %v884, %v898
        %v901 = vunpack.c.l.s4 1934713408
        %v902 = vunpack.c.0.s8 %v901
        %v903 = vperm.slane %v897, %v902
        %v905 = vunpack.c.l.s4 1934713408
        %v906 = vunpack.c.0.s8 %v905
        %v907 = vperm.slane %v899, %v906
        %v908 = vrot.slane %v895, 4
        %v909 = vsel %vm818, %v908, %v889
        %v910 = vrot.slane %v889, 4
        %v911 = vsel %vm818, %v895, %v910
        %v913 = vunpack.c.l.s4 1934713408
        %v914 = vunpack.c.0.s8 %v913
        %v915 = vperm.slane %v909, %v914
        %v917 = vunpack.c.l.s4 1934713408
        %v918 = vunpack.c.0.s8 %v917
        %v919 = vperm.slane %v911, %v918
        %v920 = vrot.slane %v915, 4
        %v921 = vsel %vm818, %v920, %v903
        %v922 = vrot.slane %v903, 4
        %v923 = vsel %vm818, %v915, %v922
        %v924 = vrot.slane %v919, 4
        %v925 = vsel %vm818, %v924, %v907
        %v926 = vrot.slane %v907, 4
        %v927 = vsel %vm818, %v919, %v926
        %v928 = vpack.c.bf16 %v921, %v921
        %v929 = vpack.c.bf16 %v923, %v923
        %v930 = vpack.c.bf16 %v925, %v925
        %v931 = vpack.c.bf16 %v927, %v927
        %933 = vrot.lane.b32.xlu0 %v766, 120
        %v934 = vpop.permute.xlu0 %933
        %936 = vrot.lane.b32.xlu0 %v766, 112
        %v937 = vpop.permute.xlu0 %936
        %939 = vrot.lane.b32.xlu0 %v766, 104
        %v940 = vpop.permute.xlu0 %939
        %v942 = vrot.slane %v937, 4
        %v943 = vsel %vm818, %v942, %v766
        %v944 = vrot.slane %v766, 4
        %v945 = vsel %vm818, %v937, %v944
        %v947 = vunpack.c.l.s4 1983009808
        %v948 = vunpack.c.0.s8 %v947
        %v949 = vperm.slane %v943, %v948
        %v951 = vunpack.c.l.s4 1983009808
        %v952 = vunpack.c.0.s8 %v951
        %v953 = vperm.slane %v945, %v952
        %v954 = vrot.slane %v940, 4
        %v955 = vsel %vm818, %v954, %v934
        %v956 = vrot.slane %v934, 4
        %v957 = vsel %vm818, %v940, %v956
        %v959 = vunpack.c.l.s4 1983009808
        %v960 = vunpack.c.0.s8 %v959
        %v961 = vperm.slane %v955, %v960
        %v963 = vunpack.c.l.s4 1983009808
        %v964 = vunpack.c.0.s8 %v963
        %v965 = vperm.slane %v957, %v964
        %v966 = vrot.slane %v961, 4
        %v967 = vsel %vm818, %v966, %v949
        %v968 = vrot.slane %v949, 4
        %v969 = vsel %vm818, %v961, %v968
        %v971 = vunpack.c.l.s4 1934713408
        %v972 = vunpack.c.0.s8 %v971
        %v973 = vperm.slane %v967, %v972
        %v975 = vunpack.c.l.s4 1934713408
        %v976 = vunpack.c.0.s8 %v975
        %v977 = vperm.slane %v969, %v976
        %v978 = vrot.slane %v965, 4
        %v979 = vsel %vm818, %v978, %v953
        %v980 = vrot.slane %v953, 4
        %v981 = vsel %vm818, %v965, %v980
        %v983 = vunpack.c.l.s4 1934713408
        %v984 = vunpack.c.0.s8 %v983
        %v985 = vperm.slane %v979, %v984
        %v987 = vunpack.c.l.s4 1934713408
        %v988 = vunpack.c.0.s8 %v987
        %v989 = vperm.slane %v981, %v988
        %v990 = vrot.slane %v973, 4
        %v991 = vsel %vm818, 0.0, %v990
        %v992 = vrot.slane %v977, 4
        %v993 = vsel %vm818, 0.0, %v992
        %v994 = vrot.slane %v985, 4
        %v995 = vsel %vm818, 0.0, %v994
        %v996 = vrot.slane %v989, 4
        %v997 = vsel %vm818, 0.0, %v996
        %v998 = vsel %vm818, %v992, %v973
        %v1000 = vunpack.c.l.s4 1983009808
        %v1001 = vunpack.c.0.s8 %v1000
        %v1002 = vperm.slane %v998, %v1001
        %v1003 = vrot.slane %v993, 4
        %v1004 = vsel %vm818, %v1003, %v991
        %v1006 = vunpack.c.l.s4 1983009808
        %v1007 = vunpack.c.0.s8 %v1006
        %v1008 = vperm.slane %v1004, %v1007
        %v1009 = vsel %vm818, %v996, %v985
        %v1011 = vunpack.c.l.s4 1983009808
        %v1012 = vunpack.c.0.s8 %v1011
        %v1013 = vperm.slane %v1009, %v1012
        %v1014 = vrot.slane %v997, 4
        %v1015 = vsel %vm818, %v1014, %v995
        %v1017 = vunpack.c.l.s4 1983009808
        %v1018 = vunpack.c.0.s8 %v1017
        %v1019 = vperm.slane %v1015, %v1018
        %v1020 = vrot.slane %v1008, 4
        %v1021 = vsel %vm818, %v1020, %v1002
        %v1022 = vrot.slane %v1002, 4
        %v1023 = vsel %vm818, %v1008, %v1022
        %v1025 = vunpack.c.l.s4 1934713408
        %v1026 = vunpack.c.0.s8 %v1025
        %v1027 = vperm.slane %v1021, %v1026
        %v1029 = vunpack.c.l.s4 1934713408
        %v1030 = vunpack.c.0.s8 %v1029
        %v1031 = vperm.slane %v1023, %v1030
        %v1032 = vrot.slane %v1019, 4
        %v1033 = vsel %vm818, %v1032, %v1013
        %v1034 = vrot.slane %v1013, 4
        %v1035 = vsel %vm818, %v1019, %v1034
        %v1037 = vunpack.c.l.s4 1934713408
        %v1038 = vunpack.c.0.s8 %v1037
        %v1039 = vperm.slane %v1033, %v1038
        %v1041 = vunpack.c.l.s4 1934713408
        %v1042 = vunpack.c.0.s8 %v1041
        %v1043 = vperm.slane %v1035, %v1042
        %v1044 = vrot.slane %v1039, 4
        %v1045 = vsel %vm818, %v1044, %v1027
        %v1046 = vrot.slane %v1027, 4
        %v1047 = vsel %vm818, %v1039, %v1046
        %v1048 = vrot.slane %v1043, 4
        %v1049 = vsel %vm818, %v1048, %v1031
        %v1050 = vrot.slane %v1031, 4
        %v1051 = vsel %vm818, %v1043, %v1050
        %v1052 = vpack.c.bf16 %v1045, %v1045
        %v1053 = vpack.c.bf16 %v1047, %v1047
        %v1054 = vpack.c.bf16 %v1049, %v1049
        %v1055 = vpack.c.bf16 %v1051, %v1051
        %1057 = vrot.lane.b32.xlu0 %v803, 120
        %v1058 = vpop.permute.xlu0 %1057
        %1060 = vrot.lane.b32.xlu0 %v803, 112
        %v1061 = vpop.permute.xlu0 %1060
        %1063 = vrot.lane.b32.xlu0 %v803, 104
        %v1064 = vpop.permute.xlu0 %1063
        %v1066 = vrot.slane %v1061, 4
        %v1067 = vsel %vm818, %v1066, %v803
        %v1068 = vrot.slane %v803, 4
        %v1069 = vsel %vm818, %v1061, %v1068
        %v1071 = vunpack.c.l.s4 1983009808
        %v1072 = vunpack.c.0.s8 %v1071
        %v1073 = vperm.slane %v1067, %v1072
        %v1075 = vunpack.c.l.s4 1983009808
        %v1076 = vunpack.c.0.s8 %v1075
        %v1077 = vperm.slane %v1069, %v1076
        %v1078 = vrot.slane %v1064, 4
        %v1079 = vsel %vm818, %v1078, %v1058
        %v1080 = vrot.slane %v1058, 4
        %v1081 = vsel %vm818, %v1064, %v1080
        %v1083 = vunpack.c.l.s4 1983009808
        %v1084 = vunpack.c.0.s8 %v1083
        %v1085 = vperm.slane %v1079, %v1084
        %v1087 = vunpack.c.l.s4 1983009808
        %v1088 = vunpack.c.0.s8 %v1087
        %v1089 = vperm.slane %v1081, %v1088
        %v1090 = vrot.slane %v1085, 4
        %v1091 = vsel %vm818, %v1090, %v1073
        %v1092 = vrot.slane %v1073, 4
        %v1093 = vsel %vm818, %v1085, %v1092
        %v1095 = vunpack.c.l.s4 1934713408
        %v1096 = vunpack.c.0.s8 %v1095
        %v1097 = vperm.slane %v1091, %v1096
        %v1099 = vunpack.c.l.s4 1934713408
        %v1100 = vunpack.c.0.s8 %v1099
        %v1101 = vperm.slane %v1093, %v1100
        %v1102 = vrot.slane %v1089, 4
        %v1103 = vsel %vm818, %v1102, %v1077
        %v1104 = vrot.slane %v1077, 4
        %v1105 = vsel %vm818, %v1089, %v1104
        %v1107 = vunpack.c.l.s4 1934713408
        %v1108 = vunpack.c.0.s8 %v1107
        %v1109 = vperm.slane %v1103, %v1108
        %v1111 = vunpack.c.l.s4 1934713408
        %v1112 = vunpack.c.0.s8 %v1111
        %v1113 = vperm.slane %v1105, %v1112
        %v1114 = vrot.slane %v1097, 4
        %v1115 = vsel %vm818, 0.0, %v1114
        %v1116 = vrot.slane %v1101, 4
        %v1117 = vsel %vm818, 0.0, %v1116
        %v1118 = vrot.slane %v1109, 4
        %v1119 = vsel %vm818, 0.0, %v1118
        %v1120 = vrot.slane %v1113, 4
        %v1121 = vsel %vm818, 0.0, %v1120
        %v1122 = vsel %vm818, %v1116, %v1097
        %v1124 = vunpack.c.l.s4 1983009808
        %v1125 = vunpack.c.0.s8 %v1124
        %v1126 = vperm.slane %v1122, %v1125
        %v1127 = vrot.slane %v1117, 4
        %v1128 = vsel %vm818, %v1127, %v1115
        %v1130 = vunpack.c.l.s4 1983009808
        %v1131 = vunpack.c.0.s8 %v1130
        %v1132 = vperm.slane %v1128, %v1131
        %v1133 = vsel %vm818, %v1120, %v1109
        %v1135 = vunpack.c.l.s4 1983009808
        %v1136 = vunpack.c.0.s8 %v1135
        %v1137 = vperm.slane %v1133, %v1136
        %v1138 = vrot.slane %v1121, 4
        %v1139 = vsel %vm818, %v1138, %v1119
        %v1141 = vunpack.c.l.s4 1983009808
        %v1142 = vunpack.c.0.s8 %v1141
        %v1143 = vperm.slane %v1139, %v1142
        %v1144 = vrot.slane %v1132, 4
        %v1145 = vsel %vm818, %v1144, %v1126
        %v1146 = vrot.slane %v1126, 4
        %v1147 = vsel %vm818, %v1132, %v1146
        %v1149 = vunpack.c.l.s4 1934713408
        %v1150 = vunpack.c.0.s8 %v1149
        %v1151 = vperm.slane %v1145, %v1150
        %v1153 = vunpack.c.l.s4 1934713408
        %v1154 = vunpack.c.0.s8 %v1153
        %v1155 = vperm.slane %v1147, %v1154
        %v1156 = vrot.slane %v1143, 4
        %v1157 = vsel %vm818, %v1156, %v1137
        %v1158 = vrot.slane %v1137, 4
        %v1159 = vsel %vm818, %v1143, %v1158
        %v1161 = vunpack.c.l.s4 1934713408
        %v1162 = vunpack.c.0.s8 %v1161
        %v1163 = vperm.slane %v1157, %v1162
        %v1165 = vunpack.c.l.s4 1934713408
        %v1166 = vunpack.c.0.s8 %v1165
        %v1167 = vperm.slane %v1159, %v1166
        %v1168 = vrot.slane %v1163, 4
        %v1169 = vsel %vm818, %v1168, %v1151
        %v1170 = vrot.slane %v1151, 4
        %v1171 = vsel %vm818, %v1163, %v1170
        %v1172 = vrot.slane %v1167, 4
        %v1173 = vsel %vm818, %v1172, %v1155
        %v1174 = vrot.slane %v1155, 4
        %v1175 = vsel %vm818, %v1167, %v1174
        %v1176 = vpack.c.bf16 %v1169, %v1169
        %v1177 = vpack.c.bf16 %v1171, %v1171
        %v1178 = vpack.c.bf16 %v1173, %v1173
        %v1179 = vpack.c.bf16 %v1175, %v1175
        %vm1180 = vcmask 64512
        %v1182 = vsel %vm1180, %v928, 0
        %v1185 = vsel %vm1180, %v1052, 0
        %1187 = vmatpush.bf16.xpose.msra.mxu0 0
        %1188 = vmatpush.bf16.xpose.msra.mxu0 0
        %1189 = vmatpush.bf16.xpose.msra.mxu0 0
        %1190 = vmatpush.bf16.xpose.msra.mxu0 0
        %1191 = vmatpush.bf16.xpose.msra.mxu0 0
        %1192 = vmatpush.bf16.xpose.msra.mxu0 0
        %1193 = vmatpush.bf16.xpose.msra.mxu0 0
        %1194 = vmatpush.bf16.xpose.msra.mxu0 %v1185
        %1195 = vmatmul.bf16.gmra.mxu0 %v1182
        %v1196 = vpop.f32.mrf.mxu0
        %v1197 = vadd.f32 0.0, %v1196
        %v1198 = vpop.f32.mrf.mxu0
        %1199 = vdwg.mxu0
        %v1201 = vsel %vm1180, %v929, 0
        %v1204 = vsel %vm1180, %v1053, 0
        %1206 = vmatpush.bf16.xpose.msra.mxu0 0
        %1207 = vmatpush.bf16.xpose.msra.mxu0 0
        %1208 = vmatpush.bf16.xpose.msra.mxu0 0
        %1209 = vmatpush.bf16.xpose.msra.mxu0 0
        %1210 = vmatpush.bf16.xpose.msra.mxu0 0
        %1211 = vmatpush.bf16.xpose.msra.mxu0 0
        %1212 = vmatpush.bf16.xpose.msra.mxu0 0
        %1213 = vmatpush.bf16.xpose.msra.mxu0 %v1204
        %1214 = vmatmul.bf16.gmra.mxu0 %v1201
        %v1215 = vpop.f32.mrf.mxu0
        %v1216 = vadd.f32 0.0, %v1215
        %v1217 = vpop.f32.mrf.mxu0
        %1218 = vdwg.mxu0
        %v1220 = vsel %vm1180, %v930, 0
        %v1223 = vsel %vm1180, %v1054, 0
        %1225 = vmatpush.bf16.xpose.msra.mxu0 0
        %1226 = vmatpush.bf16.xpose.msra.mxu0 0
        %1227 = vmatpush.bf16.xpose.msra.mxu0 0
        %1228 = vmatpush.bf16.xpose.msra.mxu0 0
        %1229 = vmatpush.bf16.xpose.msra.mxu0 0
        %1230 = vmatpush.bf16.xpose.msra.mxu0 0
        %1231 = vmatpush.bf16.xpose.msra.mxu0 0
        %1232 = vmatpush.bf16.xpose.msra.mxu0 %v1223
        %1233 = vmatmul.bf16.gmra.mxu0 %v1220
        %v1234 = vpop.f32.mrf.mxu0
        %v1235 = vadd.f32 0.0, %v1234
        %v1236 = vpop.f32.mrf.mxu0
        %1237 = vdwg.mxu0
        %v1239 = vsel %vm1180, %v931, 0
        %v1242 = vsel %vm1180, %v1055, 0
        %1244 = vmatpush.bf16.xpose.msra.mxu0 0
        %1245 = vmatpush.bf16.xpose.msra.mxu0 0
        %1246 = vmatpush.bf16.xpose.msra.mxu0 0
        %1247 = vmatpush.bf16.xpose.msra.mxu0 0
        %1248 = vmatpush.bf16.xpose.msra.mxu0 0
        %1249 = vmatpush.bf16.xpose.msra.mxu0 0
        %1250 = vmatpush.bf16.xpose.msra.mxu0 0
        %1251 = vmatpush.bf16.xpose.msra.mxu0 %v1242
        %1252 = vmatmul.bf16.gmra.mxu0 %v1239
        %v1253 = vpop.f32.mrf.mxu0
        %v1254 = vadd.f32 0.0, %v1253
        %v1255 = vpop.f32.mrf.mxu0
        %1256 = vdwg.mxu0
        %v1257 = vsel %vm1180, %v1197, -inf
        %1258 = vmax.xlane.f32.xlu0 %v1257
        %v1259 = vpop.xlane.xlu0 %1258
        %v1260 = vsel %vm1180, %v1216, -inf
        %1261 = vmax.xlane.f32.xlu0 %v1260
        %v1262 = vpop.xlane.xlu0 %1261
        %v1263 = vsel %vm1180, %v1235, -inf
        %1264 = vmax.xlane.f32.xlu0 %v1263
        %v1265 = vpop.xlane.xlu0 %1264
        %v1266 = vsel %vm1180, %v1254, -inf
        %1267 = vmax.xlane.f32.xlu0 %v1266
        %v1268 = vpop.xlane.xlu0 %1267
        %v1269 = vsub.f32 %v1197, %v1259
        %v1270 = vsub.f32 %v1216, %v1262
        %v1271 = vsub.f32 %v1235, %v1265
        %v1272 = vsub.f32 %v1254, %v1268
        %v1273 = vmul.f32 %v1269, 1.442695
        %v1274 = vpow.pop %v1273
        %v1275 = vmul.f32 %v1270, 1.442695
        %v1276 = vpow.pop %v1275
        %v1277 = vmul.f32 %v1271, 1.442695
        %v1278 = vpow.pop %v1277
        %v1279 = vmul.f32 %v1272, 1.442695
        %v1280 = vpow.pop %v1279
        %v1281 = vsel %vm1180, %v1274, 0.0
        %1282 = vadd.xlane.f32.xlu0 %v1281
        %v1283 = vpop.xlane.xlu0 %1282
        %v1284 = vsel %vm1180, %v1276, 0.0
        %1285 = vadd.xlane.f32.xlu0 %v1284
        %v1286 = vpop.xlane.xlu0 %1285
        %v1287 = vsel %vm1180, %v1278, 0.0
        %1288 = vadd.xlane.f32.xlu0 %v1287
        %v1289 = vpop.xlane.xlu0 %1288
        %v1290 = vsel %vm1180, %v1280, 0.0
        %1291 = vadd.xlane.f32.xlu0 %v1290
        %v1292 = vpop.xlane.xlu0 %1291
        %v1293 = vrcp.pop %v1283
        %v1294 = vrcp.pop %v1286
        %v1295 = vrcp.pop %v1289
        %v1296 = vrcp.pop %v1292
        %v1297 = vmul.f32 %v1274, %v1293
        %v1298 = vmul.f32 %v1276, %v1294
        %v1299 = vmul.f32 %v1278, %v1295
        %v1300 = vmul.f32 %v1280, %v1296
        %v1301 = vpack.c.bf16 %v1297, %v1297
        %v1302 = vpack.c.bf16 %v1298, %v1298
        %v1303 = vpack.c.bf16 %v1299, %v1299
        %v1304 = vpack.c.bf16 %v1300, %v1300
        %v1306 = vsel %vm1180, %v1301, 0
        %vm1308 = vcmask 1043456
        %v1310 = vsel %vm1308, %v1176, 0
        %1312 = vmatpush.bf16.msra.mxu0 0
        %1313 = vmatpush.bf16.msra.mxu0 0
        %1314 = vmatpush.bf16.msra.mxu0 0
        %1315 = vmatpush.bf16.msra.mxu0 0
        %1316 = vmatpush.bf16.msra.mxu0 0
        %1317 = vmatpush.bf16.msra.mxu0 0
        %1318 = vmatpush.bf16.msra.mxu0 0
        %1319 = vmatpush.bf16.msra.mxu0 %v1310
        %1320 = vmatmul.bf16.gmra.mxu0 %v1306
        %v1321 = vpop.f32.mrf.mxu0
        %v1322 = vadd.f32 0.0, %v1321
        %v1323 = vpop.f32.mrf.mxu0
        %1324 = vdwg.mxu0
        %v1326 = vsel %vm1180, %v1302, 0
        %v1329 = vsel %vm1308, %v1177, 0
        %1331 = vmatpush.bf16.msra.mxu0 0
        %1332 = vmatpush.bf16.msra.mxu0 0
        %1333 = vmatpush.bf16.msra.mxu0 0
        %1334 = vmatpush.bf16.msra.mxu0 0
        %1335 = vmatpush.bf16.msra.mxu0 0
        %1336 = vmatpush.bf16.msra.mxu0 0
        %1337 = vmatpush.bf16.msra.mxu0 0
        %1338 = vmatpush.bf16.msra.mxu0 %v1329
        %1339 = vmatmul.bf16.gmra.mxu0 %v1326
        %v1340 = vpop.f32.mrf.mxu0
        %v1341 = vadd.f32 0.0, %v1340
        %v1342 = vpop.f32.mrf.mxu0
        %1343 = vdwg.mxu0
        %v1345 = vsel %vm1180, %v1303, 0
        %v1348 = vsel %vm1308, %v1178, 0
        %1350 = vmatpush.bf16.msra.mxu0 0
        %1351 = vmatpush.bf16.msra.mxu0 0
        %1352 = vmatpush.bf16.msra.mxu0 0
        %1353 = vmatpush.bf16.msra.mxu0 0
        %1354 = vmatpush.bf16.msra.mxu0 0
        %1355 = vmatpush.bf16.msra.mxu0 0
        %1356 = vmatpush.bf16.msra.mxu0 0
        %1357 = vmatpush.bf16.msra.mxu0 %v1348
        %1358 = vmatmul.bf16.gmra.mxu0 %v1345
        %v1359 = vpop.f32.mrf.mxu0
        %v1360 = vadd.f32 0.0, %v1359
        %v1361 = vpop.f32.mrf.mxu0
        %1362 = vdwg.mxu0
        %v1364 = vsel %vm1180, %v1304, 0
        %v1367 = vsel %vm1308, %v1179, 0
        %1369 = vmatpush.bf16.msra.mxu0 0
        %1370 = vmatpush.bf16.msra.mxu0 0
        %1371 = vmatpush.bf16.msra.mxu0 0
        %1372 = vmatpush.bf16.msra.mxu0 0
        %1373 = vmatpush.bf16.msra.mxu0 0
        %1374 = vmatpush.bf16.msra.mxu0 0
        %1375 = vmatpush.bf16.msra.mxu0 0
        %1376 = vmatpush.bf16.msra.mxu0 %v1367
        %1377 = vmatmul.bf16.gmra.mxu0 %v1364
        %v1378 = vpop.f32.mrf.mxu0
        %v1379 = vadd.f32 0.0, %v1378
        %v1380 = vpop.f32.mrf.mxu0
        %1381 = vdwg.mxu0
        %v1382 = vrot.slane %v1360, 4
        %v1383 = vsel %vm818, %v1382, %v1322
        %v1384 = vrot.slane %v1322, 4
        %v1385 = vsel %vm818, %v1360, %v1384
        %v1387 = vunpack.c.l.s4 1983009808
        %v1388 = vunpack.c.0.s8 %v1387
        %v1389 = vperm.slane %v1383, %v1388
        %v1391 = vunpack.c.l.s4 1983009808
        %v1392 = vunpack.c.0.s8 %v1391
        %v1393 = vperm.slane %v1385, %v1392
        %v1394 = vrot.slane %v1379, 4
        %v1395 = vsel %vm818, %v1394, %v1341
        %v1396 = vrot.slane %v1341, 4
        %v1397 = vsel %vm818, %v1379, %v1396
        %v1399 = vunpack.c.l.s4 1983009808
        %v1400 = vunpack.c.0.s8 %v1399
        %v1401 = vperm.slane %v1395, %v1400
        %v1403 = vunpack.c.l.s4 1983009808
        %v1404 = vunpack.c.0.s8 %v1403
        %v1405 = vperm.slane %v1397, %v1404
        %v1406 = vrot.slane %v1401, 4
        %v1407 = vsel %vm818, %v1406, %v1389
        %v1408 = vrot.slane %v1389, 4
        %v1409 = vsel %vm818, %v1401, %v1408
        %v1411 = vunpack.c.l.s4 1934713408
        %v1412 = vunpack.c.0.s8 %v1411
        %v1413 = vperm.slane %v1407, %v1412
        %v1415 = vunpack.c.l.s4 1934713408
        %v1416 = vunpack.c.0.s8 %v1415
        %v1417 = vperm.slane %v1409, %v1416
        %v1418 = vrot.slane %v1405, 4
        %v1419 = vsel %vm818, %v1418, %v1393
        %v1420 = vrot.slane %v1393, 4
        %v1421 = vsel %vm818, %v1405, %v1420
        %v1423 = vunpack.c.l.s4 1934713408
        %v1424 = vunpack.c.0.s8 %v1423
        %v1425 = vperm.slane %v1419, %v1424
        %v1427 = vunpack.c.l.s4 1934713408
        %v1428 = vunpack.c.0.s8 %v1427
        %v1429 = vperm.slane %v1421, %v1428
        %v1430 = vrot.slane %v1413, 4
        %v1431 = vsel %vm818, 0.0, %v1430
        %v1432 = vrot.slane %v1417, 4
        %v1433 = vsel %vm818, 0.0, %v1432
        %v1434 = vrot.slane %v1425, 4
        %v1435 = vsel %vm818, 0.0, %v1434
        %v1436 = vrot.slane %v1429, 4
        %v1437 = vsel %vm818, 0.0, %v1436
        %v1438 = vsel %vm818, %v1432, %v1413
        %v1440 = vunpack.c.l.s4 1983009808
        %v1441 = vunpack.c.0.s8 %v1440
        %v1442 = vperm.slane %v1438, %v1441
        %v1443 = vrot.slane %v1433, 4
        %v1444 = vsel %vm818, %v1443, %v1431
        %v1446 = vunpack.c.l.s4 1983009808
        %v1447 = vunpack.c.0.s8 %v1446
        %v1448 = vperm.slane %v1444, %v1447
        %v1449 = vsel %vm818, %v1436, %v1425
        %v1451 = vunpack.c.l.s4 1983009808
        %v1452 = vunpack.c.0.s8 %v1451
        %v1453 = vperm.slane %v1449, %v1452
        %v1454 = vrot.slane %v1437, 4
        %v1455 = vsel %vm818, %v1454, %v1435
        %v1457 = vunpack.c.l.s4 1983009808
        %v1458 = vunpack.c.0.s8 %v1457
        %v1459 = vperm.slane %v1455, %v1458
        %v1460 = vrot.slane %v1448, 4
        %v1461 = vsel %vm818, %v1460, %v1442
        %v1462 = vrot.slane %v1442, 4
        %v1463 = vsel %vm818, %v1448, %v1462
        %v1465 = vunpack.c.l.s4 1934713408
        %v1466 = vunpack.c.0.s8 %v1465
        %v1467 = vperm.slane %v1461, %v1466
        %v1469 = vunpack.c.l.s4 1934713408
        %v1470 = vunpack.c.0.s8 %v1469
        %v1471 = vperm.slane %v1463, %v1470
        %v1472 = vrot.slane %v1459, 4
        %v1473 = vsel %vm818, %v1472, %v1453
        %v1474 = vrot.slane %v1453, 4
        %v1475 = vsel %vm818, %v1459, %v1474
        %v1477 = vunpack.c.l.s4 1934713408
        %v1478 = vunpack.c.0.s8 %v1477
        %v1479 = vperm.slane %v1473, %v1478
        %v1481 = vunpack.c.l.s4 1934713408
        %v1482 = vunpack.c.0.s8 %v1481
        %v1483 = vperm.slane %v1475, %v1482
        %v1484 = vrot.slane %v1479, 4
        %v1485 = vsel %vm818, %v1484, %v1467
        %v1486 = vrot.slane %v1467, 4
        %v1487 = vsel %vm818, %v1479, %v1486
        %v1488 = vrot.slane %v1483, 4
        %v1489 = vsel %vm818, %v1488, %v1471
        %v1490 = vrot.slane %v1471, 4
        %v1491 = vsel %vm818, %v1483, %v1490
        %1493 = vrot.lane.b32.xlu0 %v1487, 8
        %v1494 = vpop.permute.xlu0 %1493
        %1497 = vrot.lane.b32.xlu0 %v1489, 16
        %v1498 = vpop.permute.xlu0 %1497
        %1501 = vrot.lane.b32.xlu0 %v1491, 24
        %v1502 = vpop.permute.xlu0 %1501
        %v1504 = vsel %vm1180, %v1485, %v1494
        %vm1505 = vcmask 130048
        %v1506 = vsel %vm1505, %v1504, %v1498
        %vm1507 = vcmask 195584
        %v1508 = vsel %vm1507, %v1506, %v1502
        %v1509 = vpack.c.bf16 %v1508, %v1508
        %v1510 = vld [vmem:[#allocation7] sm:$0xf]
        %v1511 = vld [vmem:[#allocation7 + $0x4] sm:$0xf]
        %v1512 = vld [vmem:[#allocation7 + $0x8] sm:$0xf]
        %v1513 = vld [vmem:[#allocation7 + $0xc] sm:$0xf]
        %v1514 = vld [vmem:[%s13] sm:$0x1]
        %v1516 = vperm.slane %v1514, 0
        %v1522 = vunpack.c.l.b16 %v1510
        %v1523 = vunpack.c.l.b16 %v1511
        %v1524 = vunpack.c.l.b16 %v1512
        %v1525 = vunpack.c.l.b16 %v1513
        %v1526 = vpack.c.b16 %v1523, %v1522
        %v1527 = vpack.c.b16 %v1525, %v1524
        %v1531 = vsel %vm660, %v1509, 0
        %1533 = vmatpush.bf16.msra.mxu0 0
        %1534 = vmatpush.bf16.msra.mxu0 0
        %1535 = vmatpush.bf16.msra.mxu0 0
        %1536 = vmatpush.bf16.msra.mxu0 0
        %1537 = vmatpush.bf16.msra.mxu0 0
        %1538 = vmatpush.bf16.msra.mxu0 0
        %1539 = vmatpush.bf16.msra.mxu0 %v1527
        %1540 = vmatpush.bf16.msra.mxu0 %v1526
        %1541 = vmatmul.bf16.gmra.mxu0 %v1531
        %v1542 = vpop.f32.mrf.mxu0
        %v1543 = vadd.f32 %v1516, %v1542
        %v1544 = vpop.f32.mrf.mxu0
        %1545 = vdwg.mxu0
        %v1546 = vadd.f32 %v1543, %v656
        %v1547 = vld [vmem:[%s4] sm:$0x1]
        %v1548 = vld [vmem:[%s5] sm:$0x1]
        %v1549 = vsel %vm660, %v1546, 0.0
        %1550 = vadd.xlane.f32.xlu0 %v1549
        %v1551 = vpop.xlane.xlu0 %1550
        %v1552 = vmul.f32 %v1551, %v670
        %v1553 = vsub.f32 %v1546, %v1552
        %v1554 = vmul.f32 %v1553, %v1553
        %v1555 = vsel %vm660, %v1554, 0.0
        %1556 = vadd.xlane.f32.xlu0 %v1555
        %v1557 = vpop.xlane.xlu0 %1556
        %v1558 = vmul.f32 %v1557, %v670
        %v1559 = vadd.f32 %v1558, 1e-05
        %v1560 = vrsqrt.pop %v1559
        %v1561 = vmul.f32 %v1560, %v1559
        %v1562 = vmul.f32 %v1561, %v1560
        %v1563 = vmul.f32 0.5, %v1562
        %v1564 = vsub.f32 1.5, %v1563
        %v1565 = vmul.f32 %v1560, %v1564
        %vm1566 = vweird.f32 %v1559
        %vm1567 = vweird.f32 %v1560
        %vm1568 = vmor %vm1566, %vm1567
        %v1569 = vsel %vm1568, %v1560, %v1565
        %v1570 = vmul.f32 %v1553, %v1569
        %v1572 = vperm.slane %v1547, 0
        %v1574 = vmul.f32 %v1570, %v1572
        %v1576 = vperm.slane %v1548, 0
        %v1578 = vadd.f32 %v1574, %v1576
        %v1579 = vpack.c.bf16 %v1578, %v1578
        %v1580 = vld [vmem:[#allocation8] sm:$0xf]
        %v1581 = vld [vmem:[#allocation8 + $0x4] sm:$0xf]
        %v1582 = vld [vmem:[#allocation8 + $0x8] sm:$0xf]
        %v1583 = vld [vmem:[#allocation8 + $0xc] sm:$0xf]
        %v1584 = vld [vmem:[%s15] sm:$0x1]
        %v1586 = vperm.slane %v1584, 0
        %v1592 = vunpack.c.l.b16 %v1580
        %v1593 = vunpack.c.l.b16 %v1581
        %v1594 = vunpack.c.l.b16 %v1582
        %v1595 = vunpack.c.l.b16 %v1583
        %v1596 = vpack.c.b16 %v1593, %v1592
        %v1597 = vpack.c.b16 %v1595, %v1594
        %v1601 = vsel %vm660, %v1579, 0
        %1603 = vmatpush.bf16.msra.mxu0 0
        %1604 = vmatpush.bf16.msra.mxu0 0
        %1605 = vmatpush.bf16.msra.mxu0 0
        %1606 = vmatpush.bf16.msra.mxu0 0
        %1607 = vmatpush.bf16.msra.mxu0 0
        %1608 = vmatpush.bf16.msra.mxu0 0
        %1609 = vmatpush.bf16.msra.mxu0 %v1597
        %1610 = vmatpush.bf16.msra.mxu0 %v1596
        %1611 = vmatmul.bf16.gmra.mxu0 %v1601
        %v1612 = vpop.f32.mrf.mxu0
        %v1613 = vadd.f32 %v1586, %v1612
        %v1614 = vpop.f32.mrf.mxu0
        %1615 = vdwg.mxu0
        %v1616 = vmax.f32 %v1613, 0.0
        %v1617 = vpack.c.bf16 %v1616, %v1616
        %v1618 = vld [vmem:[%s16] sm:$0xf]
        %v1619 = vld [vmem:[%s16 + $0x4] sm:$0xf]
        %v1620 = vld [vmem:[%s16 + $0x8] sm:$0xf]
        %v1621 = vld [vmem:[%s16 + $0xc] sm:$0xf]
        %v1622 = vld [vmem:[%s16 + $0x10] sm:$0xf]
        %v1623 = vld [vmem:[%s16 + $0x14] sm:$0xf]
        %v1624 = vld [vmem:[%s16 + $0x18] sm:$0xf]
        %v1625 = vld [vmem:[%s16 + $0x1c] sm:$0xf]
        %v1626 = vld [vmem:[%s17] sm:$0x1]
        %v1628 = vperm.slane %v1626, 0
        %v1638 = vunpack.c.l.b16 %v1618
        %v1639 = vunpack.c.l.b16 %v1619
        %v1640 = vunpack.c.l.b16 %v1620
        %v1641 = vunpack.c.l.b16 %v1621
        %v1642 = vunpack.c.l.b16 %v1622
        %v1643 = vunpack.c.l.b16 %v1623
        %v1644 = vunpack.c.l.b16 %v1624
        %v1645 = vunpack.c.l.b16 %v1625
        %v1646 = vpack.c.b16 %v1639, %v1638
        %v1647 = vpack.c.b16 %v1641, %v1640
        %v1648 = vpack.c.b16 %v1643, %v1642
        %v1649 = vpack.c.b16 %v1645, %v1644
        %vm1654 = vcmask 523264
        %v1656 = vsel %vm1654, %v1617, 0
        %1658 = vmatpush.bf16.msra.mxu0 0
        %1659 = vmatpush.bf16.msra.mxu0 0
        %1660 = vmatpush.bf16.msra.mxu0 0
        %1661 = vmatpush.bf16.msra.mxu0 0
        %1662 = vmatpush.bf16.msra.mxu0 %v1649
        %1663 = vmatpush.bf16.msra.mxu0 %v1648
        %1664 = vmatpush.bf16.msra.mxu0 %v1647
        %1665 = vmatpush.bf16.msra.mxu0 %v1646
        %1666 = vmatmul.bf16.gmra.mxu0 %v1656
        %v1667 = vpop.f32.mrf.mxu0
        %v1668 = vadd.f32 %v1628, %v1667
        %v1669 = vpop.f32.mrf.mxu0
        %1670 = vdwg.mxu0
        %v1671 = vadd.f32 %v1668, %v1546
        %1672 = vst.msk [vmem:[%s646] sm:$0xff] %vm660, %v1671
        %s1673 = sand.u32 %s431, 1
        %s1674 = scalar_lea.sflag [#allocation4], %s1673
        %s1675 = sand.u32 %s431, 1
        %s1676 = smul.addr %s1675, 8
        %s1677 = scalar_lea.vmem [#allocation10], %s1676
        // Predicated region
        $region109: #{tpu_custom_call.1} parent=91 // pred_check
          %p1678 = pneg %p441
        $region110: #{tpu_custom_call.1} parent=91 // pred_check_branch
          %1680 = sbr.rel (%p1678) target = $region112
        $region111: #{tpu_custom_call.1} parent=91 // pred_region
          %1682 = vsyncadd %s1674, 0
          %s1683 = smul.addr %s35, 8
          %s1684 = scalar_lea.hbm %s18, %s1683
          %s1686 = sshll.u32 %s1677, 4
          %s1687 = int_to_ptr.vmem [resolvable:$true] %s1686
          %s1688 = sshll.u32 %s1684, 4
          %s1689 = int_to_ptr.hbm [resolvable:$true] %s1688
          %1691 = dma.vmem_to_hbm [thread:$0]  %s1687, 128, %s1689, %s1674
        $region112: #{tpu_custom_call.1} parent=91 // pred_fallthru
          _
      $region92: #{tpu_custom_call.1} parent=5 // pred_fallthru
        _
      %p1692 = scmp.le.s32.totalorder 2, %s30
      // Predicated region
      $region113: #{tpu_custom_call.1} parent=5 // pred_check
        %p1693 = pneg %p1692
      $region114: #{tpu_custom_call.1} parent=5 // pred_check_branch
        %1695 = sbr.rel (%p1693) target = $region116
      $region115: #{tpu_custom_call.1} parent=5 // pred_region
        %s1696 = ssub.s32 %s30, 2
        // Predicated region
        $region117: #{tpu_custom_call.1} parent=115 // pred_check
          %p1697 = pneg %p447
        $region118: #{tpu_custom_call.1} parent=115 // pred_check_branch
          %1699 = sbr.rel (%p1697) target = $region120
        $region119: #{tpu_custom_call.1} parent=115 // pred_region
          %s1700 = sand.u32 %s432, 1
          %s1701 = scalar_lea.sflag [#allocation4], %s1700
          %s1702 = sand.u32 %s432, 1
          %s1703 = smul.addr %s1702, 8
          %s1704 = scalar_lea.vmem [#allocation10], %s1703
          %1706 = dma.done %s1701, 128
        $region120: #{tpu_custom_call.1} parent=115 // pred_fallthru
          _
      $region116: #{tpu_custom_call.1} parent=5 // pred_fallthru
        _
    $region6: #{tpu_custom_call.1} parent=1 // loop_footer
      %s34 = sadd.s32 1, %s30
    $region7: #{tpu_custom_call.1} parent=1 // loop_footer_branch
      %29 = sbr.rel target = $region3
    $region8: #{tpu_custom_call.1} parent=1 // loop_exit
      _
    %1707 = vsyncpa [#allocation3], 1
    %s1708 = scalar_lea.sflag [#allocation3], 1
    %1709 = vsyncpa %s1708, 1
    %1710 = vsyncpa [#allocation6], 1
    %1711 = vsyncpa [#allocation9], 1
    %1712 = vsyncpa [#allocation4], 1
    %s1713 = scalar_lea.sflag [#allocation4], 1
    %1714 = vsyncpa %s1713, 1

</llo_original>
